<compile_context>
chip_gen: v7x
topology: tpu7x:2x2x1
jax: 0.10.0
libtpu: 0.0.40
codegen_flags: <defaults>
</compile_context>

<pallas_src>
import numpy as np
import jax
import jax.numpy as jnp
from jax.experimental import pallas as pl
from jax.experimental.pallas import tpu as pltpu

# ---------------------------------------------------------------- config ----
BLOCK_SIZE = 4
HEIGHT = 16
WIDTH = 16
CHANNELS = 3                       # module hard-codes 3 channels
MEAN = np.array([0.4914, 0.4822, 0.4465], dtype=np.float64)
STD = np.array([0.2470, 0.2435, 0.2616], dtype=np.float64)

assert HEIGHT % BLOCK_SIZE == 0 and WIDTH % BLOCK_SIZE == 0
A0 = HEIGHT // BLOCK_SIZE                 # blocks_axis0
A1 = WIDTH // BLOCK_SIZE                  # blocks_axis1
P = BLOCK_SIZE * BLOCK_SIZE * CHANNELS    # packed per-block length (48)
NFLAT = CHANNELS * HEIGHT * WIDTH         # flattened image length (768 = 6*128)


# -------------------------------------------------- host-side construction --
def _segment_np(x):
    """(B, C, H, W) NCHW -> (B, A0, A1, block_size*block_size*3)."""
    b = x.shape[0]
    x = np.transpose(x, (0, 2, 3, 1))                                 # NHWC
    x = x.reshape(b, A0, BLOCK_SIZE, A1, BLOCK_SIZE, CHANNELS)
    x = np.transpose(x, (0, 1, 3, 2, 4, 5))
    return x.reshape(b, A0, A1, P)


def _integrate_np(x):
    """(B, A0, A1, block_size*block_size*3) -> (B, C, H, W) NCHW."""
    b = x.shape[0]
    x = x.reshape(b, A0, A1, BLOCK_SIZE, BLOCK_SIZE, CHANNELS)
    x = np.transpose(x, (0, 1, 3, 2, 4, 5))
    x = x.reshape(b, HEIGHT, WIDTH, CHANNELS)
    return np.transpose(x, (0, 3, 1, 2))


def generate_key(seed, binary=False):
    # Deterministic stand-in for torch.manual_seed(seed) + torch.randperm(P).
    key = np.random.RandomState(seed).permutation(P)
    if binary:
        key = key > len(key) / 2
    return key


def build_fused_affine(key_perm, decrypt=False):
    """Fold denorm + segment + key-shuffle + integrate + norm into (M, bias).

    out_flat = x_flat @ M + bias  with x_flat the row-major flattened NCHW image.
    """
    key = np.asarray(key_perm)
    if decrypt:
        inv = np.empty_like(key)
        inv[key] = np.arange(P)
        key = inv

    # Total spatial permutation T (gather form): out_flat[q] = x_flat[T[q]].
    idx = np.arange(NFLAT).reshape(1, CHANNELS, HEIGHT, WIDTH)
    seg = _segment_np(idx)
    shuf = seg[..., key]                                  # out[..., j] = in[..., key[j]]
    T = _integrate_np(shuf).reshape(NFLAT)

    # Per-flat-position channel statistics (channel = q // (H*W) in NCHW).
    ch = np.repeat(np.arange(CHANNELS), HEIGHT * WIDTH)
    std_ch = STD[ch]
    mean_ch = MEAN[ch]

    # out[q] = (x[T[q]] * std[T[q]] + mean[T[q]] - mean[q]) / std[q]
    cols = np.arange(NFLAT)
    m = np.zeros((NFLAT, NFLAT), dtype=np.float64)
    m[T, cols] = std_ch[T] / std_ch[cols]
    bias = (mean_ch[T] - mean_ch[cols]) / std_ch[cols]

    # NOTE(v5e): at very large batch the dense 768x768 f32 matmul (94% zeros)
    # can become MXU-bound on v5e; a block-diagonal 48->128 padded variant
    # would cut MACs 16x.  At realistic batch the op is HBM-bound, so the
    # dense lane-aligned form is used everywhere.
    return (jnp.asarray(m.astype(np.float32)),
            jnp.asarray(bias.astype(np.float32)[None, :]))


# ----------------------------------------------------------- Pallas kernel --
def block_transform_kernel(x_ref, m_ref, b_ref, o_ref):
    # x_ref: (b_tile, 768)  batch-tile of flattened images (lane-dense)
    # m_ref: (768, 768)     fused scaled-permutation matrix (VMEM-resident)
    # b_ref: (1, 768)       fused bias
    o_ref[...] = jnp.dot(x_ref[...], m_ref[...],
                         preferred_element_type=jnp.float32) + b_ref[...]


def block_transform_forward(x, key_perm, decrypt=False):
    """Full forward: NCHW float32 in, NCHW float32 out."""
    b = x.shape[0]
    m_mat, bias = build_fused_affine(key_perm, decrypt)
    x_flat = x.astype(jnp.float32).reshape(b, NFLAT)

    # Large batch tiles per grid step (double-buffered in+out tiles plus the
    # 2.4 MiB resident matrix stay well under v7x's 64 MiB VMEM).
    b_tile = min(b, 512)
    grid = (pl.cdiv(b, b_tile),)

    out_flat = pl.pallas_call(
        block_transform_kernel,
        out_shape=jax.ShapeDtypeStruct((b, NFLAT), jnp.float32),
        grid=grid,
        in_specs=[
            pl.BlockSpec((b_tile, NFLAT), lambda i: (i, 0)),
            pl.BlockSpec((NFLAT, NFLAT), lambda i: (0, 0)),   # fetched once, reused
            pl.BlockSpec((1, NFLAT), lambda i: (0, 0)),       # fetched once, reused
        ],
        out_specs=pl.BlockSpec((b_tile, NFLAT), lambda i: (i, 0)),
        compiler_params=pltpu.CompilerParams(
            dimension_semantics=("parallel",)),
    )(x_flat, m_mat, bias)

    return out_flat.reshape(b, CHANNELS, HEIGHT, WIDTH)


# ------------------------------------------------------------- reference ----
def reference_forward(x, key_perm, decrypt=False):
    x = np.asarray(x, dtype=np.float64)
    mean = MEAN[None, :, None, None]
    std = STD[None, :, None, None]
    xd = x * std + mean                                   # denormalize
    xs = _segment_np(xd)
    key = np.asarray(key_perm)
    if decrypt:
        inv = np.empty_like(key)
        inv[key] = np.arange(P)
        key = inv
    xs = xs[..., key]                                     # per-block key shuffle
    xi = _integrate_np(xs)
    return ((xi - mean) / std).astype(np.float32)         # normalize


# ------------------------------------------------------------------ main ----
if __name__ == "__main__":
    rng = jax.random.PRNGKey(0)
    x = jax.random.uniform(rng, (2, CHANNELS, HEIGHT, WIDTH), dtype=jnp.float32)

    key_perm = generate_key(seed=2021)

    out = jax.block_until_ready(block_transform_forward(x, key_perm, decrypt=False))
    ref = reference_forward(x, key_perm, decrypt=False)
    np.testing.assert_allclose(np.asarray(out), ref, rtol=1e-5, atol=1e-5)

    # round trip: decrypt recovers the original image
    rec = jax.block_until_ready(block_transform_forward(out, key_perm, decrypt=True))
    np.testing.assert_allclose(np.asarray(rec), np.asarray(x), rtol=1e-4, atol=1e-4)

    print("KERNEL_OK")
</pallas_src>

<mosaic_0001>
module attributes {stable_mosaic.version = 11 : i64} {
  func.func @block_transform_kernel(%arg0: i32, %arg1: memref<2x768xf32, #tpu.memory_space<vmem>>, %arg2: memref<768x768xf32, #tpu.memory_space<vmem>>, %arg3: memref<1x768xf32, #tpu.memory_space<vmem>>, %arg4: memref<2x768xf32, #tpu.memory_space<vmem>>) attributes {dimension_semantics = [#tpu.dimension_semantics<parallel>], iteration_bounds = array<i64: 1>, scalar_prefetch = 0 : i64, scratch_operands = 0 : i64, tpu.core_type = #tpu.core_type<tc>, window_params = [{transform_indices = @transform_0, window_bounds = array<i64: 2, 768>}, {pipeline_mode = #tpu.pipeline_mode<synchronous>, transform_indices = @transform_1, window_bounds = array<i64: 768, 768>}, {pipeline_mode = #tpu.pipeline_mode<synchronous>, transform_indices = @transform_2, window_bounds = array<i64: 1, 768>}, {transform_indices = @transform_3, window_bounds = array<i64: 2, 768>}]} {
    %c0 = arith.constant 0 : index
    %c0_0 = arith.constant 0 : index
    %0 = vector.load %arg1[%c0, %c0_0] : memref<2x768xf32, #tpu.memory_space<vmem>>, vector<2x768xf32>
    %c0_1 = arith.constant 0 : index
    %c0_2 = arith.constant 0 : index
    %1 = vector.load %arg2[%c0_1, %c0_2] : memref<768x768xf32, #tpu.memory_space<vmem>>, vector<768x768xf32>
    %cst = arith.constant dense<0.000000e+00> : vector<2x768xf32>
    %2 = tpu.matmul %0, %1, %cst {dimension_numbers = #tpu.dot_dimension_numbers<[1], [0], [0], [1], [0, 0, 1, 1], [], []>} : vector<2x768xf32>, vector<768x768xf32>, vector<2x768xf32> -> vector<2x768xf32>
    %c0_3 = arith.constant 0 : index
    %c0_4 = arith.constant 0 : index
    %3 = vector.load %arg3[%c0_3, %c0_4] : memref<1x768xf32, #tpu.memory_space<vmem>>, vector<1x768xf32>
    %4 = vector.broadcast %3 : vector<1x768xf32> to vector<2x768xf32>
    %5 = arith.addf %2, %4 : vector<2x768xf32>
    %c0_5 = arith.constant 0 : index
    %c0_6 = arith.constant 0 : index
    %6 = vector.load %arg4[%c0_5, %c0_6] : memref<2x768xf32, #tpu.memory_space<vmem>>, vector<2x768xf32>
    tpu.vector_store %arg4[%c0_5, %c0_6], %5 {strides = array<i32>} : memref<2x768xf32, #tpu.memory_space<vmem>>, vector<2x768xf32>,
    return
  }
  func.func @transform_0(%arg0: i32) -> (i32, i32) {
    %c0_i32 = arith.constant 0 : i32
    %c0_i32_0 = arith.constant 0 : i32
    return %arg0, %c0_i32 : i32, i32
  }
  func.func @transform_1(%arg0: i32) -> (i32, i32) {
    %c0_i32 = arith.constant 0 : i32
    %c0_i32_0 = arith.constant 0 : i32
    %c0_i32_1 = arith.constant 0 : i32
    return %c0_i32, %c0_i32_0 : i32, i32
  }
  func.func @transform_2(%arg0: i32) -> (i32, i32) {
    %c0_i32 = arith.constant 0 : i32
    %c0_i32_0 = arith.constant 0 : i32
    %c0_i32_1 = arith.constant 0 : i32
    return %c0_i32, %c0_i32_0 : i32, i32
  }
  func.func @transform_3(%arg0: i32) -> (i32, i32) {
    %c0_i32 = arith.constant 0 : i32
    %c0_i32_0 = arith.constant 0 : i32
    return %arg0, %c0_i32 : i32, i32
  }
}

</mosaic_0001>

<llo_original>
// kernel: tpu_custom_call.1
$region0: #{tpu_custom_call.1}
  #allocation0 [shape = 'u32[]', space=smem, size = 0x4, offset = 0x4, fixed_abs, tag = 'smem constant byte address 0x4 - core index']
  #allocation1 [shape = 'u32[144,128]{1,0:T(1,128)}', space=vmem, size = 0x12000, scoped, tag = 'internal scratch']
  %s0 = inlined_call_operand.hbm [shape: f32[2,768], index: 0, kind: input, shape index: {}]
  %s1 = inlined_call_operand.hbm [shape: f32[768,768], index: 1, kind: input, shape index: {}]
  %s2 = inlined_call_operand.hbm [shape: f32[1,768], index: 2, kind: input, shape index: {}]
  %s3 = inlined_call_operand.hbm [shape: f32[2,768], index: 3, kind: output, shape index: {}]
  %s4 = sld [smem:[#allocation0]]
  $region34: #{tpu_custom_call.1} parent=0
    _
  %s6 = ssub.s32 1, %s4
  %s7 = scalar_select 0, %s6, %s4
  $region1: #{tpu_custom_call.1} parent=0
    #allocation2 [shape = 'u8[6144]{0}', space=vmem, size = 0x1800, scoped, tag = 'input window, operand 0, single buffered']
    #allocation3 [shape = 's32[1]{0}', space=sflag, size = 0x4, scoped, tag = 'scoped memory for tpu_custom_call.1']
    #allocation4 [shape = 's32[1]{0}', space=sflag, size = 0x4, scoped, tag = 'scoped memory for tpu_custom_call.1']
    #allocation5 [shape = 'u8[2359296]{0}', space=vmem, size = 0x240000, scoped, tag = 'input window, operand 1, single buffered']
    #allocation6 [shape = 's32[1]{0}', space=sflag, size = 0x4, scoped, tag = 'scoped memory for tpu_custom_call.1']
    #allocation7 [shape = 'u8[3072]{0}', space=vmem, size = 0xc00, scoped, tag = 'input window, operand 2, single buffered']
    #allocation8 [shape = 'u8[6144]{0}', space=vmem, size = 0x1800, scoped, tag = 'output window, operand 0, single buffered']
    %8 = vsyncpa [#allocation3], 0
    %9 = vsyncpa [#allocation6], 0
    %10 = vsyncpa [#allocation4], 0
    // Predicated region
    $region2: #{tpu_custom_call.1} parent=1 // pred_check
      _
    $region3: #{tpu_custom_call.1} parent=1 // pred_check_branch
      %12 = sbr.rel (0) target = $region5
    $region4: #{tpu_custom_call.1} parent=1 // pred_region
      %s14 = ssub.s32 192, 192
      %15 = vsyncadd [#allocation3], %s14
      %s17 = sshll.u32 [#allocation2], 4
      %s18 = int_to_ptr.vmem [resolvable:$true] %s17
      %20 = dma.hbm_to_vmem [thread:$0]  %s0, 192, %s18, [#allocation3]
    $region5: #{tpu_custom_call.1} parent=1 // pred_fallthru
      _
    // Predicated region
    $region6: #{tpu_custom_call.1} parent=1 // pred_check
      _
    $region7: #{tpu_custom_call.1} parent=1 // pred_check_branch
      %22 = sbr.rel (0) target = $region9
    $region8: #{tpu_custom_call.1} parent=1 // pred_region
      %s24 = ssub.s32 73728, 73728
      %25 = vsyncadd [#allocation6], %s24
      %s26 = sshll.u32 [#allocation5], 4
      %s27 = int_to_ptr.vmem [resolvable:$true] %s26
      %32 = dma.hbm_to_vmem [thread:$0]  %s1, 73728, %s27, [#allocation6], 768, 768, 48
    $region9: #{tpu_custom_call.1} parent=1 // pred_fallthru
      _
    // Predicated region
    $region10: #{tpu_custom_call.1} parent=1 // pred_check
      _
    $region11: #{tpu_custom_call.1} parent=1 // pred_check_branch
      %34 = sbr.rel (0) target = $region13
    $region12: #{tpu_custom_call.1} parent=1 // pred_region
      %s36 = ssub.s32 96, 96
      %37 = vsyncadd [#allocation6], %s36
      %s39 = sshll.u32 [#allocation7], 4
      %s40 = int_to_ptr.vmem [resolvable:$true] %s39
      %42 = dma.hbm_to_vmem [thread:$0]  %s2, 96, %s40, [#allocation6]
    $region13: #{tpu_custom_call.1} parent=1 // pred_fallthru
      _
    // Predicated region
    $region14: #{tpu_custom_call.1} parent=1 // pred_check
      _
    $region15: #{tpu_custom_call.1} parent=1 // pred_check_branch
      %44 = sbr.rel (0) target = $region17
    $region16: #{tpu_custom_call.1} parent=1 // pred_region
      %45 = dma.done [#allocation3], 192
    $region17: #{tpu_custom_call.1} parent=1 // pred_fallthru
      _
    // Predicated region
    $region18: #{tpu_custom_call.1} parent=1 // pred_check
      _
    $region19: #{tpu_custom_call.1} parent=1 // pred_check_branch
      %47 = sbr.rel (0) target = $region21
    $region20: #{tpu_custom_call.1} parent=1 // pred_region
      %48 = dma.done [#allocation6], 73728
    $region21: #{tpu_custom_call.1} parent=1 // pred_fallthru
      _
    // Predicated region
    $region22: #{tpu_custom_call.1} parent=1 // pred_check
      _
    $region23: #{tpu_custom_call.1} parent=1 // pred_check_branch
      %50 = sbr.rel (0) target = $region25
    $region24: #{tpu_custom_call.1} parent=1 // pred_region
      %51 = dma.done [#allocation6], 96
    $region25: #{tpu_custom_call.1} parent=1 // pred_fallthru
      _
    %v52 = vld [vmem:[#allocation2] sm:$0xff]
    %v53 = vld [vmem:[#allocation2 + $0x8] sm:$0xf]
    %v54 = vld [vmem:[#allocation5] sm:$0xff]
    %v55 = vld [vmem:[#allocation5 + $0x8] sm:$0xff]
    %v56 = vld [vmem:[#allocation5 + $0x10] sm:$0xff]
    %v57 = vld [vmem:[#allocation5 + $0x18] sm:$0xff]
    %v58 = vld [vmem:[#allocation5 + $0x20] sm:$0xff]
    %v59 = vld [vmem:[#allocation5 + $0x28] sm:$0xff]
    %v60 = vld [vmem:[#allocation5 + $0x30] sm:$0xff]
    %v61 = vld [vmem:[#allocation5 + $0x38] sm:$0xff]
    %v62 = vld [vmem:[#allocation5 + $0x40] sm:$0xff]
    %v63 = vld [vmem:[#allocation5 + $0x48] sm:$0xff]
    %v64 = vld [vmem:[#allocation5 + $0x50] sm:$0xff]
    %v65 = vld [vmem:[#allocation5 + $0x58] sm:$0xff]
    %v66 = vld [vmem:[#allocation5 + $0x60] sm:$0xff]
    %v67 = vld [vmem:[#allocation5 + $0x68] sm:$0xff]
    %v68 = vld [vmem:[#allocation5 + $0x70] sm:$0xff]
    %v69 = vld [vmem:[#allocation5 + $0x78] sm:$0xff]
    %v70 = vld [vmem:[#allocation5 + $0x80] sm:$0xff]
    %v71 = vld [vmem:[#allocation5 + $0x88] sm:$0xff]
    %v72 = vld [vmem:[#allocation5 + $0x90] sm:$0xff]
    %v73 = vld [vmem:[#allocation5 + $0x98] sm:$0xff]
    %v74 = vld [vmem:[#allocation5 + $0xa0] sm:$0xff]
    %v75 = vld [vmem:[#allocation5 + $0xa8] sm:$0xff]
    %v76 = vld [vmem:[#allocation5 + $0xb0] sm:$0xff]
    %v77 = vld [vmem:[#allocation5 + $0xb8] sm:$0xff]
    %v78 = vld [vmem:[#allocation5 + $0xc0] sm:$0xff]
    %v79 = vld [vmem:[#allocation5 + $0xc8] sm:$0xff]
    %v80 = vld [vmem:[#allocation5 + $0xd0] sm:$0xff]
    %v81 = vld [vmem:[#allocation5 + $0xd8] sm:$0xff]
    %v82 = vld [vmem:[#allocation5 + $0xe0] sm:$0xff]
    %v83 = vld [vmem:[#allocation5 + $0xe8] sm:$0xff]
    %v84 = vld [vmem:[#allocation5 + $0xf0] sm:$0xff]
    %v85 = vld [vmem:[#allocation5 + $0xf8] sm:$0xff]
    %v86 = vld [vmem:[#allocation5 + $0x100] sm:$0xff]
    %v87 = vld [vmem:[#allocation5 + $0x108] sm:$0xff]
    %v88 = vld [vmem:[#allocation5 + $0x110] sm:$0xff]
    %v89 = vld [vmem:[#allocation5 + $0x118] sm:$0xff]
    %v90 = vld [vmem:[#allocation5 + $0x120] sm:$0xff]
    %v91 = vld [vmem:[#allocation5 + $0x128] sm:$0xff]
    %v92 = vld [vmem:[#allocation5 + $0x130] sm:$0xff]
    %v93 = vld [vmem:[#allocation5 + $0x138] sm:$0xff]
    %v94 = vld [vmem:[#allocation5 + $0x140] sm:$0xff]
    %v95 = vld [vmem:[#allocation5 + $0x148] sm:$0xff]
    %v96 = vld [vmem:[#allocation5 + $0x150] sm:$0xff]
    %v97 = vld [vmem:[#allocation5 + $0x158] sm:$0xff]
    %v98 = vld [vmem:[#allocation5 + $0x160] sm:$0xff]
    %v99 = vld [vmem:[#allocation5 + $0x168] sm:$0xff]
    %v100 = vld [vmem:[#allocation5 + $0x170] sm:$0xff]
    %v101 = vld [vmem:[#allocation5 + $0x178] sm:$0xff]
    %v102 = vld [vmem:[#allocation5 + $0x180] sm:$0xff]
    %v103 = vld [vmem:[#allocation5 + $0x188] sm:$0xff]
    %v104 = vld [vmem:[#allocation5 + $0x190] sm:$0xff]
    %v105 = vld [vmem:[#allocation5 + $0x198] sm:$0xff]
    %v106 = vld [vmem:[#allocation5 + $0x1a0] sm:$0xff]
    %v107 = vld [vmem:[#allocation5 + $0x1a8] sm:$0xff]
    %v108 = vld [vmem:[#allocation5 + $0x1b0] sm:$0xff]
    %v109 = vld [vmem:[#allocation5 + $0x1b8] sm:$0xff]
    %v110 = vld [vmem:[#allocation5 + $0x1c0] sm:$0xff]
    %v111 = vld [vmem:[#allocation5 + $0x1c8] sm:$0xff]
    %v112 = vld [vmem:[#allocation5 + $0x1d0] sm:$0xff]
    %v113 = vld [vmem:[#allocation5 + $0x1d8] sm:$0xff]
    %v114 = vld [vmem:[#allocation5 + $0x1e0] sm:$0xff]
    %v115 = vld [vmem:[#allocation5 + $0x1e8] sm:$0xff]
    %v116 = vld [vmem:[#allocation5 + $0x1f0] sm:$0xff]
    %v117 = vld [vmem:[#allocation5 + $0x1f8] sm:$0xff]
    %v118 = vld [vmem:[#allocation5 + $0x200] sm:$0xff]
    %v119 = vld [vmem:[#allocation5 + $0x208] sm:$0xff]
    %v120 = vld [vmem:[#allocation5 + $0x210] sm:$0xff]
    %v121 = vld [vmem:[#allocation5 + $0x218] sm:$0xff]
    %v122 = vld [vmem:[#allocation5 + $0x220] sm:$0xff]
    %v123 = vld [vmem:[#allocation5 + $0x228] sm:$0xff]
    %v124 = vld [vmem:[#allocation5 + $0x230] sm:$0xff]
    %v125 = vld [vmem:[#allocation5 + $0x238] sm:$0xff]
    %v126 = vld [vmem:[#allocation5 + $0x240] sm:$0xff]
    %v127 = vld [vmem:[#allocation5 + $0x248] sm:$0xff]
    %v128 = vld [vmem:[#allocation5 + $0x250] sm:$0xff]
    %v129 = vld [vmem:[#allocation5 + $0x258] sm:$0xff]
    %v130 = vld [vmem:[#allocation5 + $0x260] sm:$0xff]
    %v131 = vld [vmem:[#allocation5 + $0x268] sm:$0xff]
    %v132 = vld [vmem:[#allocation5 + $0x270] sm:$0xff]
    %v133 = vld [vmem:[#allocation5 + $0x278] sm:$0xff]
    %v134 = vld [vmem:[#allocation5 + $0x280] sm:$0xff]
    %v135 = vld [vmem:[#allocation5 + $0x288] sm:$0xff]
    %v136 = vld [vmem:[#allocation5 + $0x290] sm:$0xff]
    %v137 = vld [vmem:[#allocation5 + $0x298] sm:$0xff]
    %v138 = vld [vmem:[#allocation5 + $0x2a0] sm:$0xff]
    %v139 = vld [vmem:[#allocation5 + $0x2a8] sm:$0xff]
    %v140 = vld [vmem:[#allocation5 + $0x2b0] sm:$0xff]
    %v141 = vld [vmem:[#allocation5 + $0x2b8] sm:$0xff]
    %v142 = vld [vmem:[#allocation5 + $0x2c0] sm:$0xff]
    %v143 = vld [vmem:[#allocation5 + $0x2c8] sm:$0xff]
    %v144 = vld [vmem:[#allocation5 + $0x2d0] sm:$0xff]
    %v145 = vld [vmem:[#allocation5 + $0x2d8] sm:$0xff]
    %v146 = vld [vmem:[#allocation5 + $0x2e0] sm:$0xff]
    %v147 = vld [vmem:[#allocation5 + $0x2e8] sm:$0xff]
    %v148 = vld [vmem:[#allocation5 + $0x2f0] sm:$0xff]
    %v149 = vld [vmem:[#allocation5 + $0x2f8] sm:$0xff]
    %v150 = vld [vmem:[#allocation5 + $0x300] sm:$0xff]
    %v151 = vld [vmem:[#allocation5 + $0x308] sm:$0xff]
    %v152 = vld [vmem:[#allocation5 + $0x310] sm:$0xff]
    %v153 = vld [vmem:[#allocation5 + $0x318] sm:$0xff]
    %v154 = vld [vmem:[#allocation5 + $0x320] sm:$0xff]
    %v155 = vld [vmem:[#allocation5 + $0x328] sm:$0xff]
    %v156 = vld [vmem:[#allocation5 + $0x330] sm:$0xff]
    %v157 = vld [vmem:[#allocation5 + $0x338] sm:$0xff]
    %v158 = vld [vmem:[#allocation5 + $0x340] sm:$0xff]
    %v159 = vld [vmem:[#allocation5 + $0x348] sm:$0xff]
    %v160 = vld [vmem:[#allocation5 + $0x350] sm:$0xff]
    %v161 = vld [vmem:[#allocation5 + $0x358] sm:$0xff]
    %v162 = vld [vmem:[#allocation5 + $0x360] sm:$0xff]
    %v163 = vld [vmem:[#allocation5 + $0x368] sm:$0xff]
    %v164 = vld [vmem:[#allocation5 + $0x370] sm:$0xff]
    %v165 = vld [vmem:[#allocation5 + $0x378] sm:$0xff]
    %v166 = vld [vmem:[#allocation5 + $0x380] sm:$0xff]
    %v167 = vld [vmem:[#allocation5 + $0x388] sm:$0xff]
    %v168 = vld [vmem:[#allocation5 + $0x390] sm:$0xff]
    %v169 = vld [vmem:[#allocation5 + $0x398] sm:$0xff]
    %v170 = vld [vmem:[#allocation5 + $0x3a0] sm:$0xff]
    %v171 = vld [vmem:[#allocation5 + $0x3a8] sm:$0xff]
    %v172 = vld [vmem:[#allocation5 + $0x3b0] sm:$0xff]
    %v173 = vld [vmem:[#allocation5 + $0x3b8] sm:$0xff]
    %v174 = vld [vmem:[#allocation5 + $0x3c0] sm:$0xff]
    %v175 = vld [vmem:[#allocation5 + $0x3c8] sm:$0xff]
    %v176 = vld [vmem:[#allocation5 + $0x3d0] sm:$0xff]
    %v177 = vld [vmem:[#allocation5 + $0x3d8] sm:$0xff]
    %v178 = vld [vmem:[#allocation5 + $0x3e0] sm:$0xff]
    %v179 = vld [vmem:[#allocation5 + $0x3e8] sm:$0xff]
    %v180 = vld [vmem:[#allocation5 + $0x3f0] sm:$0xff]
    %v181 = vld [vmem:[#allocation5 + $0x3f8] sm:$0xff]
    %v182 = vld [vmem:[#allocation5 + $0x400] sm:$0xff]
    %v183 = vld [vmem:[#allocation5 + $0x408] sm:$0xff]
    %v184 = vld [vmem:[#allocation5 + $0x410] sm:$0xff]
    %v185 = vld [vmem:[#allocation5 + $0x418] sm:$0xff]
    %v186 = vld [vmem:[#allocation5 + $0x420] sm:$0xff]
    %v187 = vld [vmem:[#allocation5 + $0x428] sm:$0xff]
    %v188 = vld [vmem:[#allocation5 + $0x430] sm:$0xff]
    %v189 = vld [vmem:[#allocation5 + $0x438] sm:$0xff]
    %v190 = vld [vmem:[#allocation5 + $0x440] sm:$0xff]
    %v191 = vld [vmem:[#allocation5 + $0x448] sm:$0xff]
    %v192 = vld [vmem:[#allocation5 + $0x450] sm:$0xff]
    %v193 = vld [vmem:[#allocation5 + $0x458] sm:$0xff]
    %v194 = vld [vmem:[#allocation5 + $0x460] sm:$0xff]
    %v195 = vld [vmem:[#allocation5 + $0x468] sm:$0xff]
    %v196 = vld [vmem:[#allocation5 + $0x470] sm:$0xff]
    %v197 = vld [vmem:[#allocation5 + $0x478] sm:$0xff]
    %v198 = vld [vmem:[#allocation5 + $0x480] sm:$0xff]
    %v199 = vld [vmem:[#allocation5 + $0x488] sm:$0xff]
    %v200 = vld [vmem:[#allocation5 + $0x490] sm:$0xff]
    %v201 = vld [vmem:[#allocation5 + $0x498] sm:$0xff]
    %v202 = vld [vmem:[#allocation5 + $0x4a0] sm:$0xff]
    %v203 = vld [vmem:[#allocation5 + $0x4a8] sm:$0xff]
    %v204 = vld [vmem:[#allocation5 + $0x4b0] sm:$0xff]
    %v205 = vld [vmem:[#allocation5 + $0x4b8] sm:$0xff]
    %v206 = vld [vmem:[#allocation5 + $0x4c0] sm:$0xff]
    %v207 = vld [vmem:[#allocation5 + $0x4c8] sm:$0xff]
    %v208 = vld [vmem:[#allocation5 + $0x4d0] sm:$0xff]
    %v209 = vld [vmem:[#allocation5 + $0x4d8] sm:$0xff]
    %v210 = vld [vmem:[#allocation5 + $0x4e0] sm:$0xff]
    %v211 = vld [vmem:[#allocation5 + $0x4e8] sm:$0xff]
    %v212 = vld [vmem:[#allocation5 + $0x4f0] sm:$0xff]
    %v213 = vld [vmem:[#allocation5 + $0x4f8] sm:$0xff]
    %v214 = vld [vmem:[#allocation5 + $0x500] sm:$0xff]
    %v215 = vld [vmem:[#allocation5 + $0x508] sm:$0xff]
    %v216 = vld [vmem:[#allocation5 + $0x510] sm:$0xff]
    %v217 = vld [vmem:[#allocation5 + $0x518] sm:$0xff]
    %v218 = vld [vmem:[#allocation5 + $0x520] sm:$0xff]
    %v219 = vld [vmem:[#allocation5 + $0x528] sm:$0xff]
    %v220 = vld [vmem:[#allocation5 + $0x530] sm:$0xff]
    %v221 = vld [vmem:[#allocation5 + $0x538] sm:$0xff]
    %v222 = vld [vmem:[#allocation5 + $0x540] sm:$0xff]
    %v223 = vld [vmem:[#allocation5 + $0x548] sm:$0xff]
    %v224 = vld [vmem:[#allocation5 + $0x550] sm:$0xff]
    %v225 = vld [vmem:[#allocation5 + $0x558] sm:$0xff]
    %v226 = vld [vmem:[#allocation5 + $0x560] sm:$0xff]
    %v227 = vld [vmem:[#allocation5 + $0x568] sm:$0xff]
    %v228 = vld [vmem:[#allocation5 + $0x570] sm:$0xff]
    %v229 = vld [vmem:[#allocation5 + $0x578] sm:$0xff]
    %v230 = vld [vmem:[#allocation5 + $0x580] sm:$0xff]
    %v231 = vld [vmem:[#allocation5 + $0x588] sm:$0xff]
    %v232 = vld [vmem:[#allocation5 + $0x590] sm:$0xff]
    %v233 = vld [vmem:[#allocation5 + $0x598] sm:$0xff]
    %v234 = vld [vmem:[#allocation5 + $0x5a0] sm:$0xff]
    %v235 = vld [vmem:[#allocation5 + $0x5a8] sm:$0xff]
    %v236 = vld [vmem:[#allocation5 + $0x5b0] sm:$0xff]
    %v237 = vld [vmem:[#allocation5 + $0x5b8] sm:$0xff]
    %v238 = vld [vmem:[#allocation5 + $0x5c0] sm:$0xff]
    %v239 = vld [vmem:[#allocation5 + $0x5c8] sm:$0xff]
    %v240 = vld [vmem:[#allocation5 + $0x5d0] sm:$0xff]
    %v241 = vld [vmem:[#allocation5 + $0x5d8] sm:$0xff]
    %v242 = vld [vmem:[#allocation5 + $0x5e0] sm:$0xff]
    %v243 = vld [vmem:[#allocation5 + $0x5e8] sm:$0xff]
    %v244 = vld [vmem:[#allocation5 + $0x5f0] sm:$0xff]
    %v245 = vld [vmem:[#allocation5 + $0x5f8] sm:$0xff]
    %v246 = vld [vmem:[#allocation5 + $0x600] sm:$0xff]
    %v247 = vld [vmem:[#allocation5 + $0x608] sm:$0xff]
    %v248 = vld [vmem:[#allocation5 + $0x610] sm:$0xff]
    %v249 = vld [vmem:[#allocation5 + $0x618] sm:$0xff]
    %v250 = vld [vmem:[#allocation5 + $0x620] sm:$0xff]
    %v251 = vld [vmem:[#allocation5 + $0x628] sm:$0xff]
    %v252 = vld [vmem:[#allocation5 + $0x630] sm:$0xff]
    %v253 = vld [vmem:[#allocation5 + $0x638] sm:$0xff]
    %v254 = vld [vmem:[#allocation5 + $0x640] sm:$0xff]
    %v255 = vld [vmem:[#allocation5 + $0x648] sm:$0xff]
    %v256 = vld [vmem:[#allocation5 + $0x650] sm:$0xff]
    %v257 = vld [vmem:[#allocation5 + $0x658] sm:$0xff]
    %v258 = vld [vmem:[#allocation5 + $0x660] sm:$0xff]
    %v259 = vld [vmem:[#allocation5 + $0x668] sm:$0xff]
    %v260 = vld [vmem:[#allocation5 + $0x670] sm:$0xff]
    %v261 = vld [vmem:[#allocation5 + $0x678] sm:$0xff]
    %v262 = vld [vmem:[#allocation5 + $0x680] sm:$0xff]
    %v263 = vld [vmem:[#allocation5 + $0x688] sm:$0xff]
    %v264 = vld [vmem:[#allocation5 + $0x690] sm:$0xff]
    %v265 = vld [vmem:[#allocation5 + $0x698] sm:$0xff]
    %v266 = vld [vmem:[#allocation5 + $0x6a0] sm:$0xff]
    %v267 = vld [vmem:[#allocation5 + $0x6a8] sm:$0xff]
    %v268 = vld [vmem:[#allocation5 + $0x6b0] sm:$0xff]
    %v269 = vld [vmem:[#allocation5 + $0x6b8] sm:$0xff]
    %v270 = vld [vmem:[#allocation5 + $0x6c0] sm:$0xff]
    %v271 = vld [vmem:[#allocation5 + $0x6c8] sm:$0xff]
    %v272 = vld [vmem:[#allocation5 + $0x6d0] sm:$0xff]
    %v273 = vld [vmem:[#allocation5 + $0x6d8] sm:$0xff]
    %v274 = vld [vmem:[#allocation5 + $0x6e0] sm:$0xff]
    %v275 = vld [vmem:[#allocation5 + $0x6e8] sm:$0xff]
    %v276 = vld [vmem:[#allocation5 + $0x6f0] sm:$0xff]
    %v277 = vld [vmem:[#allocation5 + $0x6f8] sm:$0xff]
    %v278 = vld [vmem:[#allocation5 + $0x700] sm:$0xff]
    %v279 = vld [vmem:[#allocation5 + $0x708] sm:$0xff]
    %v280 = vld [vmem:[#allocation5 + $0x710] sm:$0xff]
    %v281 = vld [vmem:[#allocation5 + $0x718] sm:$0xff]
    %v282 = vld [vmem:[#allocation5 + $0x720] sm:$0xff]
    %v283 = vld [vmem:[#allocation5 + $0x728] sm:$0xff]
    %v284 = vld [vmem:[#allocation5 + $0x730] sm:$0xff]
    %v285 = vld [vmem:[#allocation5 + $0x738] sm:$0xff]
    %v286 = vld [vmem:[#allocation5 + $0x740] sm:$0xff]
    %v287 = vld [vmem:[#allocation5 + $0x748] sm:$0xff]
    %v288 = vld [vmem:[#allocation5 + $0x750] sm:$0xff]
    %v289 = vld [vmem:[#allocation5 + $0x758] sm:$0xff]
    %v290 = vld [vmem:[#allocation5 + $0x760] sm:$0xff]
    %v291 = vld [vmem:[#allocation5 + $0x768] sm:$0xff]
    %v292 = vld [vmem:[#allocation5 + $0x770] sm:$0xff]
    %v293 = vld [vmem:[#allocation5 + $0x778] sm:$0xff]
    %v294 = vld [vmem:[#allocation5 + $0x780] sm:$0xff]
    %v295 = vld [vmem:[#allocation5 + $0x788] sm:$0xff]
    %v296 = vld [vmem:[#allocation5 + $0x790] sm:$0xff]
    %v297 = vld [vmem:[#allocation5 + $0x798] sm:$0xff]
    %v298 = vld [vmem:[#allocation5 + $0x7a0] sm:$0xff]
    %v299 = vld [vmem:[#allocation5 + $0x7a8] sm:$0xff]
    %v300 = vld [vmem:[#allocation5 + $0x7b0] sm:$0xff]
    %v301 = vld [vmem:[#allocation5 + $0x7b8] sm:$0xff]
    %v302 = vld [vmem:[#allocation5 + $0x7c0] sm:$0xff]
    %v303 = vld [vmem:[#allocation5 + $0x7c8] sm:$0xff]
    %v304 = vld [vmem:[#allocation5 + $0x7d0] sm:$0xff]
    %v305 = vld [vmem:[#allocation5 + $0x7d8] sm:$0xff]
    %v306 = vld [vmem:[#allocation5 + $0x7e0] sm:$0xff]
    %v307 = vld [vmem:[#allocation5 + $0x7e8] sm:$0xff]
    %v308 = vld [vmem:[#allocation5 + $0x7f0] sm:$0xff]
    %v309 = vld [vmem:[#allocation5 + $0x7f8] sm:$0xff]
    %v310 = vld [vmem:[#allocation5 + $0x800] sm:$0xff]
    %v311 = vld [vmem:[#allocation5 + $0x808] sm:$0xff]
    %v312 = vld [vmem:[#allocation5 + $0x810] sm:$0xff]
    %v313 = vld [vmem:[#allocation5 + $0x818] sm:$0xff]
    %v314 = vld [vmem:[#allocation5 + $0x820] sm:$0xff]
    %v315 = vld [vmem:[#allocation5 + $0x828] sm:$0xff]
    %v316 = vld [vmem:[#allocation5 + $0x830] sm:$0xff]
    %v317 = vld [vmem:[#allocation5 + $0x838] sm:$0xff]
    %v318 = vld [vmem:[#allocation5 + $0x840] sm:$0xff]
    %v319 = vld [vmem:[#allocation5 + $0x848] sm:$0xff]
    %v320 = vld [vmem:[#allocation5 + $0x850] sm:$0xff]
    %v321 = vld [vmem:[#allocation5 + $0x858] sm:$0xff]
    %v322 = vld [vmem:[#allocation5 + $0x860] sm:$0xff]
    %v323 = vld [vmem:[#allocation5 + $0x868] sm:$0xff]
    %v324 = vld [vmem:[#allocation5 + $0x870] sm:$0xff]
    %v325 = vld [vmem:[#allocation5 + $0x878] sm:$0xff]
    %v326 = vld [vmem:[#allocation5 + $0x880] sm:$0xff]
    %v327 = vld [vmem:[#allocation5 + $0x888] sm:$0xff]
    %v328 = vld [vmem:[#allocation5 + $0x890] sm:$0xff]
    %v329 = vld [vmem:[#allocation5 + $0x898] sm:$0xff]
    %v330 = vld [vmem:[#allocation5 + $0x8a0] sm:$0xff]
    %v331 = vld [vmem:[#allocation5 + $0x8a8] sm:$0xff]
    %v332 = vld [vmem:[#allocation5 + $0x8b0] sm:$0xff]
    %v333 = vld [vmem:[#allocation5 + $0x8b8] sm:$0xff]
    %v334 = vld [vmem:[#allocation5 + $0x8c0] sm:$0xff]
    %v335 = vld [vmem:[#allocation5 + $0x8c8] sm:$0xff]
    %v336 = vld [vmem:[#allocation5 + $0x8d0] sm:$0xff]
    %v337 = vld [vmem:[#allocation5 + $0x8d8] sm:$0xff]
    %v338 = vld [vmem:[#allocation5 + $0x8e0] sm:$0xff]
    %v339 = vld [vmem:[#allocation5 + $0x8e8] sm:$0xff]
    %v340 = vld [vmem:[#allocation5 + $0x8f0] sm:$0xff]
    %v341 = vld [vmem:[#allocation5 + $0x8f8] sm:$0xff]
    %v342 = vld [vmem:[#allocation5 + $0x900] sm:$0xff]
    %v343 = vld [vmem:[#allocation5 + $0x908] sm:$0xff]
    %v344 = vld [vmem:[#allocation5 + $0x910] sm:$0xff]
    %v345 = vld [vmem:[#allocation5 + $0x918] sm:$0xff]
    %v346 = vld [vmem:[#allocation5 + $0x920] sm:$0xff]
    %v347 = vld [vmem:[#allocation5 + $0x928] sm:$0xff]
    %v348 = vld [vmem:[#allocation5 + $0x930] sm:$0xff]
    %v349 = vld [vmem:[#allocation5 + $0x938] sm:$0xff]
    %v350 = vld [vmem:[#allocation5 + $0x940] sm:$0xff]
    %v351 = vld [vmem:[#allocation5 + $0x948] sm:$0xff]
    %v352 = vld [vmem:[#allocation5 + $0x950] sm:$0xff]
    %v353 = vld [vmem:[#allocation5 + $0x958] sm:$0xff]
    %v354 = vld [vmem:[#allocation5 + $0x960] sm:$0xff]
    %v355 = vld [vmem:[#allocation5 + $0x968] sm:$0xff]
    %v356 = vld [vmem:[#allocation5 + $0x970] sm:$0xff]
    %v357 = vld [vmem:[#allocation5 + $0x978] sm:$0xff]
    %v358 = vld [vmem:[#allocation5 + $0x980] sm:$0xff]
    %v359 = vld [vmem:[#allocation5 + $0x988] sm:$0xff]
    %v360 = vld [vmem:[#allocation5 + $0x990] sm:$0xff]
    %v361 = vld [vmem:[#allocation5 + $0x998] sm:$0xff]
    %v362 = vld [vmem:[#allocation5 + $0x9a0] sm:$0xff]
    %v363 = vld [vmem:[#allocation5 + $0x9a8] sm:$0xff]
    %v364 = vld [vmem:[#allocation5 + $0x9b0] sm:$0xff]
    %v365 = vld [vmem:[#allocation5 + $0x9b8] sm:$0xff]
    %v366 = vld [vmem:[#allocation5 + $0x9c0] sm:$0xff]
    %v367 = vld [vmem:[#allocation5 + $0x9c8] sm:$0xff]
    %v368 = vld [vmem:[#allocation5 + $0x9d0] sm:$0xff]
    %v369 = vld [vmem:[#allocation5 + $0x9d8] sm:$0xff]
    %v370 = vld [vmem:[#allocation5 + $0x9e0] sm:$0xff]
    %v371 = vld [vmem:[#allocation5 + $0x9e8] sm:$0xff]
    %v372 = vld [vmem:[#allocation5 + $0x9f0] sm:$0xff]
    %v373 = vld [vmem:[#allocation5 + $0x9f8] sm:$0xff]
    %v374 = vld [vmem:[#allocation5 + $0xa00] sm:$0xff]
    %v375 = vld [vmem:[#allocation5 + $0xa08] sm:$0xff]
    %v376 = vld [vmem:[#allocation5 + $0xa10] sm:$0xff]
    %v377 = vld [vmem:[#allocation5 + $0xa18] sm:$0xff]
    %v378 = vld [vmem:[#allocation5 + $0xa20] sm:$0xff]
    %v379 = vld [vmem:[#allocation5 + $0xa28] sm:$0xff]
    %v380 = vld [vmem:[#allocation5 + $0xa30] sm:$0xff]
    %v381 = vld [vmem:[#allocation5 + $0xa38] sm:$0xff]
    %v382 = vld [vmem:[#allocation5 + $0xa40] sm:$0xff]
    %v383 = vld [vmem:[#allocation5 + $0xa48] sm:$0xff]
    %v384 = vld [vmem:[#allocation5 + $0xa50] sm:$0xff]
    %v385 = vld [vmem:[#allocation5 + $0xa58] sm:$0xff]
    %v386 = vld [vmem:[#allocation5 + $0xa60] sm:$0xff]
    %v387 = vld [vmem:[#allocation5 + $0xa68] sm:$0xff]
    %v388 = vld [vmem:[#allocation5 + $0xa70] sm:$0xff]
    %v389 = vld [vmem:[#allocation5 + $0xa78] sm:$0xff]
    %v390 = vld [vmem:[#allocation5 + $0xa80] sm:$0xff]
    %v391 = vld [vmem:[#allocation5 + $0xa88] sm:$0xff]
    %v392 = vld [vmem:[#allocation5 + $0xa90] sm:$0xff]
    %v393 = vld [vmem:[#allocation5 + $0xa98] sm:$0xff]
    %v394 = vld [vmem:[#allocation5 + $0xaa0] sm:$0xff]
    %v395 = vld [vmem:[#allocation5 + $0xaa8] sm:$0xff]
    %v396 = vld [vmem:[#allocation5 + $0xab0] sm:$0xff]
    %v397 = vld [vmem:[#allocation5 + $0xab8] sm:$0xff]
    %v398 = vld [vmem:[#allocation5 + $0xac0] sm:$0xff]
    %v399 = vld [vmem:[#allocation5 + $0xac8] sm:$0xff]
    %v400 = vld [vmem:[#allocation5 + $0xad0] sm:$0xff]
    %v401 = vld [vmem:[#allocation5 + $0xad8] sm:$0xff]
    %v402 = vld [vmem:[#allocation5 + $0xae0] sm:$0xff]
    %v403 = vld [vmem:[#allocation5 + $0xae8] sm:$0xff]
    %v404 = vld [vmem:[#allocation5 + $0xaf0] sm:$0xff]
    %v405 = vld [vmem:[#allocation5 + $0xaf8] sm:$0xff]
    %v406 = vld [vmem:[#allocation5 + $0xb00] sm:$0xff]
    %v407 = vld [vmem:[#allocation5 + $0xb08] sm:$0xff]
    %v408 = vld [vmem:[#allocation5 + $0xb10] sm:$0xff]
    %v409 = vld [vmem:[#allocation5 + $0xb18] sm:$0xff]
    %v410 = vld [vmem:[#allocation5 + $0xb20] sm:$0xff]
    %v411 = vld [vmem:[#allocation5 + $0xb28] sm:$0xff]
    %v412 = vld [vmem:[#allocation5 + $0xb30] sm:$0xff]
    %v413 = vld [vmem:[#allocation5 + $0xb38] sm:$0xff]
    %v414 = vld [vmem:[#allocation5 + $0xb40] sm:$0xff]
    %v415 = vld [vmem:[#allocation5 + $0xb48] sm:$0xff]
    %v416 = vld [vmem:[#allocation5 + $0xb50] sm:$0xff]
    %v417 = vld [vmem:[#allocation5 + $0xb58] sm:$0xff]
    %v418 = vld [vmem:[#allocation5 + $0xb60] sm:$0xff]
    %v419 = vld [vmem:[#allocation5 + $0xb68] sm:$0xff]
    %v420 = vld [vmem:[#allocation5 + $0xb70] sm:$0xff]
    %v421 = vld [vmem:[#allocation5 + $0xb78] sm:$0xff]
    %v422 = vld [vmem:[#allocation5 + $0xb80] sm:$0xff]
    %v423 = vld [vmem:[#allocation5 + $0xb88] sm:$0xff]
    %v424 = vld [vmem:[#allocation5 + $0xb90] sm:$0xff]
    %v425 = vld [vmem:[#allocation5 + $0xb98] sm:$0xff]
    %v426 = vld [vmem:[#allocation5 + $0xba0] sm:$0xff]
    %v427 = vld [vmem:[#allocation5 + $0xba8] sm:$0xff]
    %v428 = vld [vmem:[#allocation5 + $0xbb0] sm:$0xff]
    %v429 = vld [vmem:[#allocation5 + $0xbb8] sm:$0xff]
    %v430 = vld [vmem:[#allocation5 + $0xbc0] sm:$0xff]
    %v431 = vld [vmem:[#allocation5 + $0xbc8] sm:$0xff]
    %v432 = vld [vmem:[#allocation5 + $0xbd0] sm:$0xff]
    %v433 = vld [vmem:[#allocation5 + $0xbd8] sm:$0xff]
    %v434 = vld [vmem:[#allocation5 + $0xbe0] sm:$0xff]
    %v435 = vld [vmem:[#allocation5 + $0xbe8] sm:$0xff]
    %v436 = vld [vmem:[#allocation5 + $0xbf0] sm:$0xff]
    %v437 = vld [vmem:[#allocation5 + $0xbf8] sm:$0xff]
    %v438 = vld [vmem:[#allocation5 + $0xc00] sm:$0xff]
    %v439 = vld [vmem:[#allocation5 + $0xc08] sm:$0xff]
    %v440 = vld [vmem:[#allocation5 + $0xc10] sm:$0xff]
    %v441 = vld [vmem:[#allocation5 + $0xc18] sm:$0xff]
    %v442 = vld [vmem:[#allocation5 + $0xc20] sm:$0xff]
    %v443 = vld [vmem:[#allocation5 + $0xc28] sm:$0xff]
    %v444 = vld [vmem:[#allocation5 + $0xc30] sm:$0xff]
    %v445 = vld [vmem:[#allocation5 + $0xc38] sm:$0xff]
    %v446 = vld [vmem:[#allocation5 + $0xc40] sm:$0xff]
    %v447 = vld [vmem:[#allocation5 + $0xc48] sm:$0xff]
    %v448 = vld [vmem:[#allocation5 + $0xc50] sm:$0xff]
    %v449 = vld [vmem:[#allocation5 + $0xc58] sm:$0xff]
    %v450 = vld [vmem:[#allocation5 + $0xc60] sm:$0xff]
    %v451 = vld [vmem:[#allocation5 + $0xc68] sm:$0xff]
    %v452 = vld [vmem:[#allocation5 + $0xc70] sm:$0xff]
    %v453 = vld [vmem:[#allocation5 + $0xc78] sm:$0xff]
    %v454 = vld [vmem:[#allocation5 + $0xc80] sm:$0xff]
    %v455 = vld [vmem:[#allocation5 + $0xc88] sm:$0xff]
    %v456 = vld [vmem:[#allocation5 + $0xc90] sm:$0xff]
    %v457 = vld [vmem:[#allocation5 + $0xc98] sm:$0xff]
    %v458 = vld [vmem:[#allocation5 + $0xca0] sm:$0xff]
    %v459 = vld [vmem:[#allocation5 + $0xca8] sm:$0xff]
    %v460 = vld [vmem:[#allocation5 + $0xcb0] sm:$0xff]
    %v461 = vld [vmem:[#allocation5 + $0xcb8] sm:$0xff]
    %v462 = vld [vmem:[#allocation5 + $0xcc0] sm:$0xff]
    %v463 = vld [vmem:[#allocation5 + $0xcc8] sm:$0xff]
    %v464 = vld [vmem:[#allocation5 + $0xcd0] sm:$0xff]
    %v465 = vld [vmem:[#allocation5 + $0xcd8] sm:$0xff]
    %v466 = vld [vmem:[#allocation5 + $0xce0] sm:$0xff]
    %v467 = vld [vmem:[#allocation5 + $0xce8] sm:$0xff]
    %v468 = vld [vmem:[#allocation5 + $0xcf0] sm:$0xff]
    %v469 = vld [vmem:[#allocation5 + $0xcf8] sm:$0xff]
    %v470 = vld [vmem:[#allocation5 + $0xd00] sm:$0xff]
    %v471 = vld [vmem:[#allocation5 + $0xd08] sm:$0xff]
    %v472 = vld [vmem:[#allocation5 + $0xd10] sm:$0xff]
    %v473 = vld [vmem:[#allocation5 + $0xd18] sm:$0xff]
    %v474 = vld [vmem:[#allocation5 + $0xd20] sm:$0xff]
    %v475 = vld [vmem:[#allocation5 + $0xd28] sm:$0xff]
    %v476 = vld [vmem:[#allocation5 + $0xd30] sm:$0xff]
    %v477 = vld [vmem:[#allocation5 + $0xd38] sm:$0xff]
    %v478 = vld [vmem:[#allocation5 + $0xd40] sm:$0xff]
    %v479 = vld [vmem:[#allocation5 + $0xd48] sm:$0xff]
    %v480 = vld [vmem:[#allocation5 + $0xd50] sm:$0xff]
    %v481 = vld [vmem:[#allocation5 + $0xd58] sm:$0xff]
    %v482 = vld [vmem:[#allocation5 + $0xd60] sm:$0xff]
    %v483 = vld [vmem:[#allocation5 + $0xd68] sm:$0xff]
    %v484 = vld [vmem:[#allocation5 + $0xd70] sm:$0xff]
    %v485 = vld [vmem:[#allocation5 + $0xd78] sm:$0xff]
    %v486 = vld [vmem:[#allocation5 + $0xd80] sm:$0xff]
    %v487 = vld [vmem:[#allocation5 + $0xd88] sm:$0xff]
    %v488 = vld [vmem:[#allocation5 + $0xd90] sm:$0xff]
    %v489 = vld [vmem:[#allocation5 + $0xd98] sm:$0xff]
    %v490 = vld [vmem:[#allocation5 + $0xda0] sm:$0xff]
    %v491 = vld [vmem:[#allocation5 + $0xda8] sm:$0xff]
    %v492 = vld [vmem:[#allocation5 + $0xdb0] sm:$0xff]
    %v493 = vld [vmem:[#allocation5 + $0xdb8] sm:$0xff]
    %v494 = vld [vmem:[#allocation5 + $0xdc0] sm:$0xff]
    %v495 = vld [vmem:[#allocation5 + $0xdc8] sm:$0xff]
    %v496 = vld [vmem:[#allocation5 + $0xdd0] sm:$0xff]
    %v497 = vld [vmem:[#allocation5 + $0xdd8] sm:$0xff]
    %v498 = vld [vmem:[#allocation5 + $0xde0] sm:$0xff]
    %v499 = vld [vmem:[#allocation5 + $0xde8] sm:$0xff]
    %v500 = vld [vmem:[#allocation5 + $0xdf0] sm:$0xff]
    %v501 = vld [vmem:[#allocation5 + $0xdf8] sm:$0xff]
    %v502 = vld [vmem:[#allocation5 + $0xe00] sm:$0xff]
    %v503 = vld [vmem:[#allocation5 + $0xe08] sm:$0xff]
    %v504 = vld [vmem:[#allocation5 + $0xe10] sm:$0xff]
    %v505 = vld [vmem:[#allocation5 + $0xe18] sm:$0xff]
    %v506 = vld [vmem:[#allocation5 + $0xe20] sm:$0xff]
    %v507 = vld [vmem:[#allocation5 + $0xe28] sm:$0xff]
    %v508 = vld [vmem:[#allocation5 + $0xe30] sm:$0xff]
    %v509 = vld [vmem:[#allocation5 + $0xe38] sm:$0xff]
    %v510 = vld [vmem:[#allocation5 + $0xe40] sm:$0xff]
    %v511 = vld [vmem:[#allocation5 + $0xe48] sm:$0xff]
    %v512 = vld [vmem:[#allocation5 + $0xe50] sm:$0xff]
    %v513 = vld [vmem:[#allocation5 + $0xe58] sm:$0xff]
    %v514 = vld [vmem:[#allocation5 + $0xe60] sm:$0xff]
    %v515 = vld [vmem:[#allocation5 + $0xe68] sm:$0xff]
    %v516 = vld [vmem:[#allocation5 + $0xe70] sm:$0xff]
    %v517 = vld [vmem:[#allocation5 + $0xe78] sm:$0xff]
    %v518 = vld [vmem:[#allocation5 + $0xe80] sm:$0xff]
    %v519 = vld [vmem:[#allocation5 + $0xe88] sm:$0xff]
    %v520 = vld [vmem:[#allocation5 + $0xe90] sm:$0xff]
    %v521 = vld [vmem:[#allocation5 + $0xe98] sm:$0xff]
    %v522 = vld [vmem:[#allocation5 + $0xea0] sm:$0xff]
    %v523 = vld [vmem:[#allocation5 + $0xea8] sm:$0xff]
    %v524 = vld [vmem:[#allocation5 + $0xeb0] sm:$0xff]
    %v525 = vld [vmem:[#allocation5 + $0xeb8] sm:$0xff]
    %v526 = vld [vmem:[#allocation5 + $0xec0] sm:$0xff]
    %v527 = vld [vmem:[#allocation5 + $0xec8] sm:$0xff]
    %v528 = vld [vmem:[#allocation5 + $0xed0] sm:$0xff]
    %v529 = vld [vmem:[#allocation5 + $0xed8] sm:$0xff]
    %v530 = vld [vmem:[#allocation5 + $0xee0] sm:$0xff]
    %v531 = vld [vmem:[#allocation5 + $0xee8] sm:$0xff]
    %v532 = vld [vmem:[#allocation5 + $0xef0] sm:$0xff]
    %v533 = vld [vmem:[#allocation5 + $0xef8] sm:$0xff]
    %v534 = vld [vmem:[#allocation5 + $0xf00] sm:$0xff]
    %v535 = vld [vmem:[#allocation5 + $0xf08] sm:$0xff]
    %v536 = vld [vmem:[#allocation5 + $0xf10] sm:$0xff]
    %v537 = vld [vmem:[#allocation5 + $0xf18] sm:$0xff]
    %v538 = vld [vmem:[#allocation5 + $0xf20] sm:$0xff]
    %v539 = vld [vmem:[#allocation5 + $0xf28] sm:$0xff]
    %v540 = vld [vmem:[#allocation5 + $0xf30] sm:$0xff]
    %v541 = vld [vmem:[#allocation5 + $0xf38] sm:$0xff]
    %v542 = vld [vmem:[#allocation5 + $0xf40] sm:$0xff]
    %v543 = vld [vmem:[#allocation5 + $0xf48] sm:$0xff]
    %v544 = vld [vmem:[#allocation5 + $0xf50] sm:$0xff]
    %v545 = vld [vmem:[#allocation5 + $0xf58] sm:$0xff]
    %v546 = vld [vmem:[#allocation5 + $0xf60] sm:$0xff]
    %v547 = vld [vmem:[#allocation5 + $0xf68] sm:$0xff]
    %v548 = vld [vmem:[#allocation5 + $0xf70] sm:$0xff]
    %v549 = vld [vmem:[#allocation5 + $0xf78] sm:$0xff]
    %v550 = vld [vmem:[#allocation5 + $0xf80] sm:$0xff]
    %v551 = vld [vmem:[#allocation5 + $0xf88] sm:$0xff]
    %v552 = vld [vmem:[#allocation5 + $0xf90] sm:$0xff]
    %v553 = vld [vmem:[#allocation5 + $0xf98] sm:$0xff]
    %v554 = vld [vmem:[#allocation5 + $0xfa0] sm:$0xff]
    %v555 = vld [vmem:[#allocation5 + $0xfa8] sm:$0xff]
    %v556 = vld [vmem:[#allocation5 + $0xfb0] sm:$0xff]
    %v557 = vld [vmem:[#allocation5 + $0xfb8] sm:$0xff]
    %v558 = vld [vmem:[#allocation5 + $0xfc0] sm:$0xff]
    %v559 = vld [vmem:[#allocation5 + $0xfc8] sm:$0xff]
    %v560 = vld [vmem:[#allocation5 + $0xfd0] sm:$0xff]
    %v561 = vld [vmem:[#allocation5 + $0xfd8] sm:$0xff]
    %v562 = vld [vmem:[#allocation5 + $0xfe0] sm:$0xff]
    %v563 = vld [vmem:[#allocation5 + $0xfe8] sm:$0xff]
    %v564 = vld [vmem:[#allocation5 + $0xff0] sm:$0xff]
    %v565 = vld [vmem:[#allocation5 + $0xff8] sm:$0xff]
    %v566 = vld [vmem:[#allocation5 + $0x1000] sm:$0xff]
    %v567 = vld [vmem:[#allocation5 + $0x1008] sm:$0xff]
    %v568 = vld [vmem:[#allocation5 + $0x1010] sm:$0xff]
    %v569 = vld [vmem:[#allocation5 + $0x1018] sm:$0xff]
    %v570 = vld [vmem:[#allocation5 + $0x1020] sm:$0xff]
    %v571 = vld [vmem:[#allocation5 + $0x1028] sm:$0xff]
    %v572 = vld [vmem:[#allocation5 + $0x1030] sm:$0xff]
    %v573 = vld [vmem:[#allocation5 + $0x1038] sm:$0xff]
    %v574 = vld [vmem:[#allocation5 + $0x1040] sm:$0xff]
    %v575 = vld [vmem:[#allocation5 + $0x1048] sm:$0xff]
    %v576 = vld [vmem:[#allocation5 + $0x1050] sm:$0xff]
    %v577 = vld [vmem:[#allocation5 + $0x1058] sm:$0xff]
    %v578 = vld [vmem:[#allocation5 + $0x1060] sm:$0xff]
    %v579 = vld [vmem:[#allocation5 + $0x1068] sm:$0xff]
    %v580 = vld [vmem:[#allocation5 + $0x1070] sm:$0xff]
    %v581 = vld [vmem:[#allocation5 + $0x1078] sm:$0xff]
    %v582 = vld [vmem:[#allocation5 + $0x1080] sm:$0xff]
    %v583 = vld [vmem:[#allocation5 + $0x1088] sm:$0xff]
    %v584 = vld [vmem:[#allocation5 + $0x1090] sm:$0xff]
    %v585 = vld [vmem:[#allocation5 + $0x1098] sm:$0xff]
    %v586 = vld [vmem:[#allocation5 + $0x10a0] sm:$0xff]
    %v587 = vld [vmem:[#allocation5 + $0x10a8] sm:$0xff]
    %v588 = vld [vmem:[#allocation5 + $0x10b0] sm:$0xff]
    %v589 = vld [vmem:[#allocation5 + $0x10b8] sm:$0xff]
    %v590 = vld [vmem:[#allocation5 + $0x10c0] sm:$0xff]
    %v591 = vld [vmem:[#allocation5 + $0x10c8] sm:$0xff]
    %v592 = vld [vmem:[#allocation5 + $0x10d0] sm:$0xff]
    %v593 = vld [vmem:[#allocation5 + $0x10d8] sm:$0xff]
    %v594 = vld [vmem:[#allocation5 + $0x10e0] sm:$0xff]
    %v595 = vld [vmem:[#allocation5 + $0x10e8] sm:$0xff]
    %v596 = vld [vmem:[#allocation5 + $0x10f0] sm:$0xff]
    %v597 = vld [vmem:[#allocation5 + $0x10f8] sm:$0xff]
    %v598 = vld [vmem:[#allocation5 + $0x1100] sm:$0xff]
    %v599 = vld [vmem:[#allocation5 + $0x1108] sm:$0xff]
    %v600 = vld [vmem:[#allocation5 + $0x1110] sm:$0xff]
    %v601 = vld [vmem:[#allocation5 + $0x1118] sm:$0xff]
    %v602 = vld [vmem:[#allocation5 + $0x1120] sm:$0xff]
    %v603 = vld [vmem:[#allocation5 + $0x1128] sm:$0xff]
    %v604 = vld [vmem:[#allocation5 + $0x1130] sm:$0xff]
    %v605 = vld [vmem:[#allocation5 + $0x1138] sm:$0xff]
    %v606 = vld [vmem:[#allocation5 + $0x1140] sm:$0xff]
    %v607 = vld [vmem:[#allocation5 + $0x1148] sm:$0xff]
    %v608 = vld [vmem:[#allocation5 + $0x1150] sm:$0xff]
    %v609 = vld [vmem:[#allocation5 + $0x1158] sm:$0xff]
    %v610 = vld [vmem:[#allocation5 + $0x1160] sm:$0xff]
    %v611 = vld [vmem:[#allocation5 + $0x1168] sm:$0xff]
    %v612 = vld [vmem:[#allocation5 + $0x1170] sm:$0xff]
    %v613 = vld [vmem:[#allocation5 + $0x1178] sm:$0xff]
    %v614 = vld [vmem:[#allocation5 + $0x1180] sm:$0xff]
    %v615 = vld [vmem:[#allocation5 + $0x1188] sm:$0xff]
    %v616 = vld [vmem:[#allocation5 + $0x1190] sm:$0xff]
    %v617 = vld [vmem:[#allocation5 + $0x1198] sm:$0xff]
    %v618 = vld [vmem:[#allocation5 + $0x11a0] sm:$0xff]
    %v619 = vld [vmem:[#allocation5 + $0x11a8] sm:$0xff]
    %v620 = vld [vmem:[#allocation5 + $0x11b0] sm:$0xff]
    %v621 = vld [vmem:[#allocation5 + $0x11b8] sm:$0xff]
    %v622 = vld [vmem:[#allocation5 + $0x11c0] sm:$0xff]
    %v623 = vld [vmem:[#allocation5 + $0x11c8] sm:$0xff]
    %v624 = vld [vmem:[#allocation5 + $0x11d0] sm:$0xff]
    %v625 = vld [vmem:[#allocation5 + $0x11d8] sm:$0xff]
    %v626 = vld [vmem:[#allocation5 + $0x11e0] sm:$0xff]
    %v627 = vld [vmem:[#allocation5 + $0x11e8] sm:$0xff]
    %v628 = vld [vmem:[#allocation5 + $0x11f0] sm:$0xff]
    %v629 = vld [vmem:[#allocation5 + $0x11f8] sm:$0xff]
    %v630 = vld [vmem:[#allocation7] sm:$0x3f]
    %v632 = vlaneseq
    %v633 = vshrl.u32 %v632, 7
    %v634 = vsub.s32 0, %v633
    %v635 = vrot.slane %v630, %v634
    %v636 = vlaneseq
    %v637 = vshrl.u32 %v636, 7
    %v638 = vsub.s32 1, %v637
    %v639 = vrot.slane %v630, %v638
    %v640 = vlaneseq
    %v641 = vshrl.u32 %v640, 7
    %v642 = vsub.s32 2, %v641
    %v643 = vrot.slane %v630, %v642
    %v644 = vlaneseq
    %v645 = vshrl.u32 %v644, 7
    %v646 = vsub.s32 3, %v645
    %v647 = vrot.slane %v630, %v646
    %v648 = vlaneseq
    %v649 = vshrl.u32 %v648, 7
    %v650 = vsub.s32 4, %v649
    %v651 = vrot.slane %v630, %v650
    %v652 = vlaneseq
    %v653 = vshrl.u32 %v652, 7
    %v654 = vsub.s32 5, %v653
    %v655 = vrot.slane %v630, %v654
    %v664 = vcombine.high %v52, %v52
    %v666 = vunpack.c.l.s4 1983009808
    %v667 = vunpack.c.0.s8 %v666
    %v668 = vlaneseq
    %v669 = vshrl.u32 %v668, 7
    %v670 = vsub.s32 %v667, %v669
    %v671 = vrot.slane %v52, %v670
    %v673 = vunpack.c.l.s4 1983009808
    %v674 = vunpack.c.0.s8 %v673
    %v675 = vlaneseq
    %v676 = vshrl.u32 %v675, 7
    %v677 = vsub.s32 %v674, %v676
    %v678 = vrot.slane %v664, %v677
    %v679 = vcombine.high %v671, %v671
    %v680 = vcombine.high %v678, %v678
    %v682 = vunpack.c.l.s4 1983009808
    %v683 = vunpack.c.0.s8 %v682
    %v684 = vlaneseq
    %v685 = vshrl.u32 %v684, 7
    %v686 = vsub.s32 %v683, %v685
    %v687 = vrot.slane %v53, %v686
    %v688 = vcombine.high %v687, %v687
    %695 = vmatprep.subr.mxu0 %v55
    %696 = vmatpush1.msra.mxu0 %v54
    %697 = vmatprep.subr.mxu0 %v61
    %698 = vmatpush1.msra.mxu0 %v60
    %699 = vmatprep.subr.mxu0 %v67
    %700 = vmatpush1.msra.mxu0 %v66
    %701 = vmatprep.subr.mxu0 %v73
    %702 = vmatpush1.msra.mxu0 %v72
    %703 = vmatprep.subr.mxu0 %v79
    %704 = vmatpush1.msra.mxu0 %v78
    %705 = vmatprep.subr.mxu0 %v85
    %706 = vmatpush1.msra.mxu0 %v84
    %707 = vmatprep.subr.mxu0 %v91
    %708 = vmatpush1.msra.mxu0 %v90
    %709 = vmatprep.subr.mxu0 %v97
    %710 = vmatpush1.msra.mxu0 %v96
    %711 = vmatprep.subr.mxu0 %v103
    %712 = vmatpush1.msra.mxu0 %v102
    %713 = vmatprep.subr.mxu0 %v109
    %714 = vmatpush1.msra.mxu0 %v108
    %715 = vmatprep.subr.mxu0 %v115
    %716 = vmatpush1.msra.mxu0 %v114
    %717 = vmatprep.subr.mxu0 %v121
    %718 = vmatpush1.msra.mxu0 %v120
    %719 = vmatprep.subr.mxu0 %v127
    %720 = vmatpush1.msra.mxu0 %v126
    %721 = vmatprep.subr.mxu0 %v133
    %722 = vmatpush1.msra.mxu0 %v132
    %723 = vmatprep.subr.mxu0 %v139
    %724 = vmatpush1.msra.mxu0 %v138
    %725 = vmatprep.subr.mxu0 %v145
    %726 = vmatpush1.msra.mxu0 %v144
    %727 = vmatprep.subr.mxu0 %v151
    %728 = vmatpush1.msra.mxu0 %v150
    %729 = vmatprep.subr.mxu0 %v157
    %730 = vmatpush1.msra.mxu0 %v156
    %731 = vmatprep.subr.mxu0 %v163
    %732 = vmatpush1.msra.mxu0 %v162
    %733 = vmatprep.subr.mxu0 %v169
    %734 = vmatpush1.msra.mxu0 %v168
    %735 = vmatprep.subr.mxu0 %v175
    %736 = vmatpush1.msra.mxu0 %v174
    %737 = vmatprep.subr.mxu0 %v181
    %738 = vmatpush1.msra.mxu0 %v180
    %739 = vmatprep.subr.mxu0 %v187
    %740 = vmatpush1.msra.mxu0 %v186
    %741 = vmatprep.subr.mxu0 %v193
    %742 = vmatpush1.msra.mxu0 %v192
    %743 = vmatprep.subr.mxu0 %v199
    %744 = vmatpush1.msra.mxu0 %v198
    %745 = vmatprep.subr.mxu0 %v205
    %746 = vmatpush1.msra.mxu0 %v204
    %747 = vmatprep.subr.mxu0 %v211
    %748 = vmatpush1.msra.mxu0 %v210
    %749 = vmatprep.subr.mxu0 %v217
    %750 = vmatpush1.msra.mxu0 %v216
    %751 = vmatprep.subr.mxu0 %v223
    %752 = vmatpush1.msra.mxu0 %v222
    %753 = vmatprep.subr.mxu0 %v229
    %754 = vmatpush1.msra.mxu0 %v228
    %755 = vmatprep.subr.mxu0 %v235
    %756 = vmatpush1.msra.mxu0 %v234
    %757 = vmatprep.subr.mxu0 %v241
    %758 = vmatpush1.msra.mxu0 %v240
    %759 = vmatprep.mubr.f32.mxu0 %v679
    %760 = vmatmul.mubr.f32.gmra.mrb[0].mxu0 %v671
    %v761 = vpop.f32.mrb[0].mxu0
    %v762 = vadd.f32 %v635, %v761
    %v763 = vpop.f32.mrb[0].mxu0
    %v764 = vadd.f32 %v639, %v763
    %765 = vdwg.mxu0
    %766 = vmatprep.subr.mxu0 %v247
    %767 = vmatpush1.msra.mxu0 %v246
    %768 = vmatprep.subr.mxu0 %v253
    %769 = vmatpush1.msra.mxu0 %v252
    %770 = vmatprep.subr.mxu0 %v259
    %771 = vmatpush1.msra.mxu0 %v258
    %772 = vmatprep.subr.mxu0 %v265
    %773 = vmatpush1.msra.mxu0 %v264
    %774 = vmatprep.subr.mxu0 %v271
    %775 = vmatpush1.msra.mxu0 %v270
    %776 = vmatprep.subr.mxu0 %v277
    %777 = vmatpush1.msra.mxu0 %v276
    %778 = vmatprep.subr.mxu0 %v283
    %779 = vmatpush1.msra.mxu0 %v282
    %780 = vmatprep.subr.mxu0 %v289
    %781 = vmatpush1.msra.mxu0 %v288
    %782 = vmatprep.subr.mxu0 %v295
    %783 = vmatpush1.msra.mxu0 %v294
    %784 = vmatprep.subr.mxu0 %v301
    %785 = vmatpush1.msra.mxu0 %v300
    %786 = vmatprep.subr.mxu0 %v307
    %787 = vmatpush1.msra.mxu0 %v306
    %788 = vmatprep.subr.mxu0 %v313
    %789 = vmatpush1.msra.mxu0 %v312
    %790 = vmatprep.subr.mxu0 %v319
    %791 = vmatpush1.msra.mxu0 %v318
    %792 = vmatprep.subr.mxu0 %v325
    %793 = vmatpush1.msra.mxu0 %v324
    %794 = vmatprep.subr.mxu0 %v331
    %795 = vmatpush1.msra.mxu0 %v330
    %796 = vmatprep.subr.mxu0 %v337
    %797 = vmatpush1.msra.mxu0 %v336
    %798 = vmatprep.subr.mxu0 %v343
    %799 = vmatpush1.msra.mxu0 %v342
    %800 = vmatprep.subr.mxu0 %v349
    %801 = vmatpush1.msra.mxu0 %v348
    %802 = vmatprep.subr.mxu0 %v355
    %803 = vmatpush1.msra.mxu0 %v354
    %804 = vmatprep.subr.mxu0 %v361
    %805 = vmatpush1.msra.mxu0 %v360
    %806 = vmatprep.subr.mxu0 %v367
    %807 = vmatpush1.msra.mxu0 %v366
    %808 = vmatprep.subr.mxu0 %v373
    %809 = vmatpush1.msra.mxu0 %v372
    %810 = vmatprep.subr.mxu0 %v379
    %811 = vmatpush1.msra.mxu0 %v378
    %812 = vmatprep.subr.mxu0 %v385
    %813 = vmatpush1.msra.mxu0 %v384
    %814 = vmatprep.subr.mxu0 %v391
    %815 = vmatpush1.msra.mxu0 %v390
    %816 = vmatprep.subr.mxu0 %v397
    %817 = vmatpush1.msra.mxu0 %v396
    %818 = vmatprep.subr.mxu0 %v403
    %819 = vmatpush1.msra.mxu0 %v402
    %820 = vmatprep.subr.mxu0 %v409
    %821 = vmatpush1.msra.mxu0 %v408
    %822 = vmatprep.subr.mxu0 %v415
    %823 = vmatpush1.msra.mxu0 %v414
    %824 = vmatprep.subr.mxu0 %v421
    %825 = vmatpush1.msra.mxu0 %v420
    %826 = vmatprep.subr.mxu0 %v427
    %827 = vmatpush1.msra.mxu0 %v426
    %828 = vmatprep.subr.mxu0 %v433
    %829 = vmatpush1.msra.mxu0 %v432
    %830 = vmatprep.mubr.f32.mxu0 %v680
    %831 = vmatmul.mubr.f32.gmra.mrb[0].mxu0 %v678
    %v832 = vpop.f32.mrb[0].mxu0
    %v833 = vadd.f32 %v762, %v832
    %v834 = vpop.f32.mrb[0].mxu0
    %v835 = vadd.f32 %v764, %v834
    %836 = vdwg.mxu0
    %837 = vmatprep.subr.mxu0 %v439
    %838 = vmatpush1.msra.mxu0 %v438
    %839 = vmatprep.subr.mxu0 %v445
    %840 = vmatpush1.msra.mxu0 %v444
    %841 = vmatprep.subr.mxu0 %v451
    %842 = vmatpush1.msra.mxu0 %v450
    %843 = vmatprep.subr.mxu0 %v457
    %844 = vmatpush1.msra.mxu0 %v456
    %845 = vmatprep.subr.mxu0 %v463
    %846 = vmatpush1.msra.mxu0 %v462
    %847 = vmatprep.subr.mxu0 %v469
    %848 = vmatpush1.msra.mxu0 %v468
    %849 = vmatprep.subr.mxu0 %v475
    %850 = vmatpush1.msra.mxu0 %v474
    %851 = vmatprep.subr.mxu0 %v481
    %852 = vmatpush1.msra.mxu0 %v480
    %853 = vmatprep.subr.mxu0 %v487
    %854 = vmatpush1.msra.mxu0 %v486
    %855 = vmatprep.subr.mxu0 %v493
    %856 = vmatpush1.msra.mxu0 %v492
    %857 = vmatprep.subr.mxu0 %v499
    %858 = vmatpush1.msra.mxu0 %v498
    %859 = vmatprep.subr.mxu0 %v505
    %860 = vmatpush1.msra.mxu0 %v504
    %861 = vmatprep.subr.mxu0 %v511
    %862 = vmatpush1.msra.mxu0 %v510
    %863 = vmatprep.subr.mxu0 %v517
    %864 = vmatpush1.msra.mxu0 %v516
    %865 = vmatprep.subr.mxu0 %v523
    %866 = vmatpush1.msra.mxu0 %v522
    %867 = vmatprep.subr.mxu0 %v529
    %868 = vmatpush1.msra.mxu0 %v528
    %869 = vmatprep.subr.mxu0 %v535
    %870 = vmatpush1.msra.mxu0 %v534
    %871 = vmatprep.subr.mxu0 %v541
    %872 = vmatpush1.msra.mxu0 %v540
    %873 = vmatprep.subr.mxu0 %v547
    %874 = vmatpush1.msra.mxu0 %v546
    %875 = vmatprep.subr.mxu0 %v553
    %876 = vmatpush1.msra.mxu0 %v552
    %877 = vmatprep.subr.mxu0 %v559
    %878 = vmatpush1.msra.mxu0 %v558
    %879 = vmatprep.subr.mxu0 %v565
    %880 = vmatpush1.msra.mxu0 %v564
    %881 = vmatprep.subr.mxu0 %v571
    %882 = vmatpush1.msra.mxu0 %v570
    %883 = vmatprep.subr.mxu0 %v577
    %884 = vmatpush1.msra.mxu0 %v576
    %885 = vmatprep.subr.mxu0 %v583
    %886 = vmatpush1.msra.mxu0 %v582
    %887 = vmatprep.subr.mxu0 %v589
    %888 = vmatpush1.msra.mxu0 %v588
    %889 = vmatprep.subr.mxu0 %v595
    %890 = vmatpush1.msra.mxu0 %v594
    %891 = vmatprep.subr.mxu0 %v601
    %892 = vmatpush1.msra.mxu0 %v600
    %893 = vmatprep.subr.mxu0 %v607
    %894 = vmatpush1.msra.mxu0 %v606
    %895 = vmatprep.subr.mxu0 %v613
    %896 = vmatpush1.msra.mxu0 %v612
    %897 = vmatprep.subr.mxu0 %v619
    %898 = vmatpush1.msra.mxu0 %v618
    %899 = vmatprep.subr.mxu0 %v625
    %900 = vmatpush1.msra.mxu0 %v624
    %901 = vmatprep.mubr.f32.mxu0 %v688
    %902 = vmatmul.mubr.f32.gmra.mrb[0].mxu0 %v687
    %v903 = vpop.f32.mrb[0].mxu0
    %v904 = vadd.f32 %v833, %v903
    %v905 = vpop.f32.mrb[0].mxu0
    %v906 = vadd.f32 %v835, %v905
    %907 = vdwg.mxu0
    %908 = vmatprep.subr.mxu0 %v57
    %909 = vmatpush1.msra.mxu0 %v56
    %910 = vmatprep.subr.mxu0 %v63
    %911 = vmatpush1.msra.mxu0 %v62
    %912 = vmatprep.subr.mxu0 %v69
    %913 = vmatpush1.msra.mxu0 %v68
    %914 = vmatprep.subr.mxu0 %v75
    %915 = vmatpush1.msra.mxu0 %v74
    %916 = vmatprep.subr.mxu0 %v81
    %917 = vmatpush1.msra.mxu0 %v80
    %918 = vmatprep.subr.mxu0 %v87
    %919 = vmatpush1.msra.mxu0 %v86
    %920 = vmatprep.subr.mxu0 %v93
    %921 = vmatpush1.msra.mxu0 %v92
    %922 = vmatprep.subr.mxu0 %v99
    %923 = vmatpush1.msra.mxu0 %v98
    %924 = vmatprep.subr.mxu0 %v105
    %925 = vmatpush1.msra.mxu0 %v104
    %926 = vmatprep.subr.mxu0 %v111
    %927 = vmatpush1.msra.mxu0 %v110
    %928 = vmatprep.subr.mxu0 %v117
    %929 = vmatpush1.msra.mxu0 %v116
    %930 = vmatprep.subr.mxu0 %v123
    %931 = vmatpush1.msra.mxu0 %v122
    %932 = vmatprep.subr.mxu0 %v129
    %933 = vmatpush1.msra.mxu0 %v128
    %934 = vmatprep.subr.mxu0 %v135
    %935 = vmatpush1.msra.mxu0 %v134
    %936 = vmatprep.subr.mxu0 %v141
    %937 = vmatpush1.msra.mxu0 %v140
    %938 = vmatprep.subr.mxu0 %v147
    %939 = vmatpush1.msra.mxu0 %v146
    %940 = vmatprep.subr.mxu0 %v153
    %941 = vmatpush1.msra.mxu0 %v152
    %942 = vmatprep.subr.mxu0 %v159
    %943 = vmatpush1.msra.mxu0 %v158
    %944 = vmatprep.subr.mxu0 %v165
    %945 = vmatpush1.msra.mxu0 %v164
    %946 = vmatprep.subr.mxu0 %v171
    %947 = vmatpush1.msra.mxu0 %v170
    %948 = vmatprep.subr.mxu0 %v177
    %949 = vmatpush1.msra.mxu0 %v176
    %950 = vmatprep.subr.mxu0 %v183
    %951 = vmatpush1.msra.mxu0 %v182
    %952 = vmatprep.subr.mxu0 %v189
    %953 = vmatpush1.msra.mxu0 %v188
    %954 = vmatprep.subr.mxu0 %v195
    %955 = vmatpush1.msra.mxu0 %v194
    %956 = vmatprep.subr.mxu0 %v201
    %957 = vmatpush1.msra.mxu0 %v200
    %958 = vmatprep.subr.mxu0 %v207
    %959 = vmatpush1.msra.mxu0 %v206
    %960 = vmatprep.subr.mxu0 %v213
    %961 = vmatpush1.msra.mxu0 %v212
    %962 = vmatprep.subr.mxu0 %v219
    %963 = vmatpush1.msra.mxu0 %v218
    %964 = vmatprep.subr.mxu0 %v225
    %965 = vmatpush1.msra.mxu0 %v224
    %966 = vmatprep.subr.mxu0 %v231
    %967 = vmatpush1.msra.mxu0 %v230
    %968 = vmatprep.subr.mxu0 %v237
    %969 = vmatpush1.msra.mxu0 %v236
    %970 = vmatprep.subr.mxu0 %v243
    %971 = vmatpush1.msra.mxu0 %v242
    %972 = vmatprep.mubr.f32.mxu0 %v679
    %973 = vmatmul.mubr.f32.gmra.mrb[0].mxu0 %v671
    %v974 = vpop.f32.mrb[0].mxu0
    %v975 = vadd.f32 %v643, %v974
    %v976 = vpop.f32.mrb[0].mxu0
    %v977 = vadd.f32 %v647, %v976
    %978 = vdwg.mxu0
    %979 = vmatprep.subr.mxu0 %v249
    %980 = vmatpush1.msra.mxu0 %v248
    %981 = vmatprep.subr.mxu0 %v255
    %982 = vmatpush1.msra.mxu0 %v254
    %983 = vmatprep.subr.mxu0 %v261
    %984 = vmatpush1.msra.mxu0 %v260
    %985 = vmatprep.subr.mxu0 %v267
    %986 = vmatpush1.msra.mxu0 %v266
    %987 = vmatprep.subr.mxu0 %v273
    %988 = vmatpush1.msra.mxu0 %v272
    %989 = vmatprep.subr.mxu0 %v279
    %990 = vmatpush1.msra.mxu0 %v278
    %991 = vmatprep.subr.mxu0 %v285
    %992 = vmatpush1.msra.mxu0 %v284
    %993 = vmatprep.subr.mxu0 %v291
    %994 = vmatpush1.msra.mxu0 %v290
    %995 = vmatprep.subr.mxu0 %v297
    %996 = vmatpush1.msra.mxu0 %v296
    %997 = vmatprep.subr.mxu0 %v303
    %998 = vmatpush1.msra.mxu0 %v302
    %999 = vmatprep.subr.mxu0 %v309
    %1000 = vmatpush1.msra.mxu0 %v308
    %1001 = vmatprep.subr.mxu0 %v315
    %1002 = vmatpush1.msra.mxu0 %v314
    %1003 = vmatprep.subr.mxu0 %v321
    %1004 = vmatpush1.msra.mxu0 %v320
    %1005 = vmatprep.subr.mxu0 %v327
    %1006 = vmatpush1.msra.mxu0 %v326
    %1007 = vmatprep.subr.mxu0 %v333
    %1008 = vmatpush1.msra.mxu0 %v332
    %1009 = vmatprep.subr.mxu0 %v339
    %1010 = vmatpush1.msra.mxu0 %v338
    %1011 = vmatprep.subr.mxu0 %v345
    %1012 = vmatpush1.msra.mxu0 %v344
    %1013 = vmatprep.subr.mxu0 %v351
    %1014 = vmatpush1.msra.mxu0 %v350
    %1015 = vmatprep.subr.mxu0 %v357
    %1016 = vmatpush1.msra.mxu0 %v356
    %1017 = vmatprep.subr.mxu0 %v363
    %1018 = vmatpush1.msra.mxu0 %v362
    %1019 = vmatprep.subr.mxu0 %v369
    %1020 = vmatpush1.msra.mxu0 %v368
    %1021 = vmatprep.subr.mxu0 %v375
    %1022 = vmatpush1.msra.mxu0 %v374
    %1023 = vmatprep.subr.mxu0 %v381
    %1024 = vmatpush1.msra.mxu0 %v380
    %1025 = vmatprep.subr.mxu0 %v387
    %1026 = vmatpush1.msra.mxu0 %v386
    %1027 = vmatprep.subr.mxu0 %v393
    %1028 = vmatpush1.msra.mxu0 %v392
    %1029 = vmatprep.subr.mxu0 %v399
    %1030 = vmatpush1.msra.mxu0 %v398
    %1031 = vmatprep.subr.mxu0 %v405
    %1032 = vmatpush1.msra.mxu0 %v404
    %1033 = vmatprep.subr.mxu0 %v411
    %1034 = vmatpush1.msra.mxu0 %v410
    %1035 = vmatprep.subr.mxu0 %v417
    %1036 = vmatpush1.msra.mxu0 %v416
    %1037 = vmatprep.subr.mxu0 %v423
    %1038 = vmatpush1.msra.mxu0 %v422
    %1039 = vmatprep.subr.mxu0 %v429
    %1040 = vmatpush1.msra.mxu0 %v428
    %1041 = vmatprep.subr.mxu0 %v435
    %1042 = vmatpush1.msra.mxu0 %v434
    %1043 = vmatprep.mubr.f32.mxu0 %v680
    %1044 = vmatmul.mubr.f32.gmra.mrb[0].mxu0 %v678
    %v1045 = vpop.f32.mrb[0].mxu0
    %v1046 = vadd.f32 %v975, %v1045
    %v1047 = vpop.f32.mrb[0].mxu0
    %v1048 = vadd.f32 %v977, %v1047
    %1049 = vdwg.mxu0
    %1050 = vmatprep.subr.mxu0 %v441
    %1051 = vmatpush1.msra.mxu0 %v440
    %1052 = vmatprep.subr.mxu0 %v447
    %1053 = vmatpush1.msra.mxu0 %v446
    %1054 = vmatprep.subr.mxu0 %v453
    %1055 = vmatpush1.msra.mxu0 %v452
    %1056 = vmatprep.subr.mxu0 %v459
    %1057 = vmatpush1.msra.mxu0 %v458
    %1058 = vmatprep.subr.mxu0 %v465
    %1059 = vmatpush1.msra.mxu0 %v464
    %1060 = vmatprep.subr.mxu0 %v471
    %1061 = vmatpush1.msra.mxu0 %v470
    %1062 = vmatprep.subr.mxu0 %v477
    %1063 = vmatpush1.msra.mxu0 %v476
    %1064 = vmatprep.subr.mxu0 %v483
    %1065 = vmatpush1.msra.mxu0 %v482
    %1066 = vmatprep.subr.mxu0 %v489
    %1067 = vmatpush1.msra.mxu0 %v488
    %1068 = vmatprep.subr.mxu0 %v495
    %1069 = vmatpush1.msra.mxu0 %v494
    %1070 = vmatprep.subr.mxu0 %v501
    %1071 = vmatpush1.msra.mxu0 %v500
    %1072 = vmatprep.subr.mxu0 %v507
    %1073 = vmatpush1.msra.mxu0 %v506
    %1074 = vmatprep.subr.mxu0 %v513
    %1075 = vmatpush1.msra.mxu0 %v512
    %1076 = vmatprep.subr.mxu0 %v519
    %1077 = vmatpush1.msra.mxu0 %v518
    %1078 = vmatprep.subr.mxu0 %v525
    %1079 = vmatpush1.msra.mxu0 %v524
    %1080 = vmatprep.subr.mxu0 %v531
    %1081 = vmatpush1.msra.mxu0 %v530
    %1082 = vmatprep.subr.mxu0 %v537
    %1083 = vmatpush1.msra.mxu0 %v536
    %1084 = vmatprep.subr.mxu0 %v543
    %1085 = vmatpush1.msra.mxu0 %v542
    %1086 = vmatprep.subr.mxu0 %v549
    %1087 = vmatpush1.msra.mxu0 %v548
    %1088 = vmatprep.subr.mxu0 %v555
    %1089 = vmatpush1.msra.mxu0 %v554
    %1090 = vmatprep.subr.mxu0 %v561
    %1091 = vmatpush1.msra.mxu0 %v560
    %1092 = vmatprep.subr.mxu0 %v567
    %1093 = vmatpush1.msra.mxu0 %v566
    %1094 = vmatprep.subr.mxu0 %v573
    %1095 = vmatpush1.msra.mxu0 %v572
    %1096 = vmatprep.subr.mxu0 %v579
    %1097 = vmatpush1.msra.mxu0 %v578
    %1098 = vmatprep.subr.mxu0 %v585
    %1099 = vmatpush1.msra.mxu0 %v584
    %1100 = vmatprep.subr.mxu0 %v591
    %1101 = vmatpush1.msra.mxu0 %v590
    %1102 = vmatprep.subr.mxu0 %v597
    %1103 = vmatpush1.msra.mxu0 %v596
    %1104 = vmatprep.subr.mxu0 %v603
    %1105 = vmatpush1.msra.mxu0 %v602
    %1106 = vmatprep.subr.mxu0 %v609
    %1107 = vmatpush1.msra.mxu0 %v608
    %1108 = vmatprep.subr.mxu0 %v615
    %1109 = vmatpush1.msra.mxu0 %v614
    %1110 = vmatprep.subr.mxu0 %v621
    %1111 = vmatpush1.msra.mxu0 %v620
    %1112 = vmatprep.subr.mxu0 %v627
    %1113 = vmatpush1.msra.mxu0 %v626
    %1114 = vmatprep.mubr.f32.mxu0 %v688
    %1115 = vmatmul.mubr.f32.gmra.mrb[0].mxu0 %v687
    %v1116 = vpop.f32.mrb[0].mxu0
    %v1117 = vadd.f32 %v1046, %v1116
    %v1118 = vpop.f32.mrb[0].mxu0
    %v1119 = vadd.f32 %v1048, %v1118
    %1120 = vdwg.mxu0
    %1121 = vmatprep.subr.mxu0 %v59
    %1122 = vmatpush1.msra.mxu0 %v58
    %1123 = vmatprep.subr.mxu0 %v65
    %1124 = vmatpush1.msra.mxu0 %v64
    %1125 = vmatprep.subr.mxu0 %v71
    %1126 = vmatpush1.msra.mxu0 %v70
    %1127 = vmatprep.subr.mxu0 %v77
    %1128 = vmatpush1.msra.mxu0 %v76
    %1129 = vmatprep.subr.mxu0 %v83
    %1130 = vmatpush1.msra.mxu0 %v82
    %1131 = vmatprep.subr.mxu0 %v89
    %1132 = vmatpush1.msra.mxu0 %v88
    %1133 = vmatprep.subr.mxu0 %v95
    %1134 = vmatpush1.msra.mxu0 %v94
    %1135 = vmatprep.subr.mxu0 %v101
    %1136 = vmatpush1.msra.mxu0 %v100
    %1137 = vmatprep.subr.mxu0 %v107
    %1138 = vmatpush1.msra.mxu0 %v106
    %1139 = vmatprep.subr.mxu0 %v113
    %1140 = vmatpush1.msra.mxu0 %v112
    %1141 = vmatprep.subr.mxu0 %v119
    %1142 = vmatpush1.msra.mxu0 %v118
    %1143 = vmatprep.subr.mxu0 %v125
    %1144 = vmatpush1.msra.mxu0 %v124
    %1145 = vmatprep.subr.mxu0 %v131
    %1146 = vmatpush1.msra.mxu0 %v130
    %1147 = vmatprep.subr.mxu0 %v137
    %1148 = vmatpush1.msra.mxu0 %v136
    %1149 = vmatprep.subr.mxu0 %v143
    %1150 = vmatpush1.msra.mxu0 %v142
    %1151 = vmatprep.subr.mxu0 %v149
    %1152 = vmatpush1.msra.mxu0 %v148
    %1153 = vmatprep.subr.mxu0 %v155
    %1154 = vmatpush1.msra.mxu0 %v154
    %1155 = vmatprep.subr.mxu0 %v161
    %1156 = vmatpush1.msra.mxu0 %v160
    %1157 = vmatprep.subr.mxu0 %v167
    %1158 = vmatpush1.msra.mxu0 %v166
    %1159 = vmatprep.subr.mxu0 %v173
    %1160 = vmatpush1.msra.mxu0 %v172
    %1161 = vmatprep.subr.mxu0 %v179
    %1162 = vmatpush1.msra.mxu0 %v178
    %1163 = vmatprep.subr.mxu0 %v185
    %1164 = vmatpush1.msra.mxu0 %v184
    %1165 = vmatprep.subr.mxu0 %v191
    %1166 = vmatpush1.msra.mxu0 %v190
    %1167 = vmatprep.subr.mxu0 %v197
    %1168 = vmatpush1.msra.mxu0 %v196
    %1169 = vmatprep.subr.mxu0 %v203
    %1170 = vmatpush1.msra.mxu0 %v202
    %1171 = vmatprep.subr.mxu0 %v209
    %1172 = vmatpush1.msra.mxu0 %v208
    %1173 = vmatprep.subr.mxu0 %v215
    %1174 = vmatpush1.msra.mxu0 %v214
    %1175 = vmatprep.subr.mxu0 %v221
    %1176 = vmatpush1.msra.mxu0 %v220
    %1177 = vmatprep.subr.mxu0 %v227
    %1178 = vmatpush1.msra.mxu0 %v226
    %1179 = vmatprep.subr.mxu0 %v233
    %1180 = vmatpush1.msra.mxu0 %v232
    %1181 = vmatprep.subr.mxu0 %v239
    %1182 = vmatpush1.msra.mxu0 %v238
    %1183 = vmatprep.subr.mxu0 %v245
    %1184 = vmatpush1.msra.mxu0 %v244
    %1185 = vmatprep.mubr.f32.mxu0 %v679
    %1186 = vmatmul.mubr.f32.gmra.mrb[0].mxu0 %v671
    %v1187 = vpop.f32.mrb[0].mxu0
    %v1188 = vadd.f32 %v651, %v1187
    %v1189 = vpop.f32.mrb[0].mxu0
    %v1190 = vadd.f32 %v655, %v1189
    %1191 = vdwg.mxu0
    %1192 = vmatprep.subr.mxu0 %v251
    %1193 = vmatpush1.msra.mxu0 %v250
    %1194 = vmatprep.subr.mxu0 %v257
    %1195 = vmatpush1.msra.mxu0 %v256
    %1196 = vmatprep.subr.mxu0 %v263
    %1197 = vmatpush1.msra.mxu0 %v262
    %1198 = vmatprep.subr.mxu0 %v269
    %1199 = vmatpush1.msra.mxu0 %v268
    %1200 = vmatprep.subr.mxu0 %v275
    %1201 = vmatpush1.msra.mxu0 %v274
    %1202 = vmatprep.subr.mxu0 %v281
    %1203 = vmatpush1.msra.mxu0 %v280
    %1204 = vmatprep.subr.mxu0 %v287
    %1205 = vmatpush1.msra.mxu0 %v286
    %1206 = vmatprep.subr.mxu0 %v293
    %1207 = vmatpush1.msra.mxu0 %v292
    %1208 = vmatprep.subr.mxu0 %v299
    %1209 = vmatpush1.msra.mxu0 %v298
    %1210 = vmatprep.subr.mxu0 %v305
    %1211 = vmatpush1.msra.mxu0 %v304
    %1212 = vmatprep.subr.mxu0 %v311
    %1213 = vmatpush1.msra.mxu0 %v310
    %1214 = vmatprep.subr.mxu0 %v317
    %1215 = vmatpush1.msra.mxu0 %v316
    %1216 = vmatprep.subr.mxu0 %v323
    %1217 = vmatpush1.msra.mxu0 %v322
    %1218 = vmatprep.subr.mxu0 %v329
    %1219 = vmatpush1.msra.mxu0 %v328
    %1220 = vmatprep.subr.mxu0 %v335
    %1221 = vmatpush1.msra.mxu0 %v334
    %1222 = vmatprep.subr.mxu0 %v341
    %1223 = vmatpush1.msra.mxu0 %v340
    %1224 = vmatprep.subr.mxu0 %v347
    %1225 = vmatpush1.msra.mxu0 %v346
    %1226 = vmatprep.subr.mxu0 %v353
    %1227 = vmatpush1.msra.mxu0 %v352
    %1228 = vmatprep.subr.mxu0 %v359
    %1229 = vmatpush1.msra.mxu0 %v358
    %1230 = vmatprep.subr.mxu0 %v365
    %1231 = vmatpush1.msra.mxu0 %v364
    %1232 = vmatprep.subr.mxu0 %v371
    %1233 = vmatpush1.msra.mxu0 %v370
    %1234 = vmatprep.subr.mxu0 %v377
    %1235 = vmatpush1.msra.mxu0 %v376
    %1236 = vmatprep.subr.mxu0 %v383
    %1237 = vmatpush1.msra.mxu0 %v382
    %1238 = vmatprep.subr.mxu0 %v389
    %1239 = vmatpush1.msra.mxu0 %v388
    %1240 = vmatprep.subr.mxu0 %v395
    %1241 = vmatpush1.msra.mxu0 %v394
    %1242 = vmatprep.subr.mxu0 %v401
    %1243 = vmatpush1.msra.mxu0 %v400
    %1244 = vmatprep.subr.mxu0 %v407
    %1245 = vmatpush1.msra.mxu0 %v406
    %1246 = vmatprep.subr.mxu0 %v413
    %1247 = vmatpush1.msra.mxu0 %v412
    %1248 = vmatprep.subr.mxu0 %v419
    %1249 = vmatpush1.msra.mxu0 %v418
    %1250 = vmatprep.subr.mxu0 %v425
    %1251 = vmatpush1.msra.mxu0 %v424
    %1252 = vmatprep.subr.mxu0 %v431
    %1253 = vmatpush1.msra.mxu0 %v430
    %1254 = vmatprep.subr.mxu0 %v437
    %1255 = vmatpush1.msra.mxu0 %v436
    %1256 = vmatprep.mubr.f32.mxu0 %v680
    %1257 = vmatmul.mubr.f32.gmra.mrb[0].mxu0 %v678
    %v1258 = vpop.f32.mrb[0].mxu0
    %v1259 = vadd.f32 %v1188, %v1258
    %v1260 = vpop.f32.mrb[0].mxu0
    %v1261 = vadd.f32 %v1190, %v1260
    %1262 = vdwg.mxu0
    %1263 = vmatprep.subr.mxu0 %v443
    %1264 = vmatpush1.msra.mxu0 %v442
    %1265 = vmatprep.subr.mxu0 %v449
    %1266 = vmatpush1.msra.mxu0 %v448
    %1267 = vmatprep.subr.mxu0 %v455
    %1268 = vmatpush1.msra.mxu0 %v454
    %1269 = vmatprep.subr.mxu0 %v461
    %1270 = vmatpush1.msra.mxu0 %v460
    %1271 = vmatprep.subr.mxu0 %v467
    %1272 = vmatpush1.msra.mxu0 %v466
    %1273 = vmatprep.subr.mxu0 %v473
    %1274 = vmatpush1.msra.mxu0 %v472
    %1275 = vmatprep.subr.mxu0 %v479
    %1276 = vmatpush1.msra.mxu0 %v478
    %1277 = vmatprep.subr.mxu0 %v485
    %1278 = vmatpush1.msra.mxu0 %v484
    %1279 = vmatprep.subr.mxu0 %v491
    %1280 = vmatpush1.msra.mxu0 %v490
    %1281 = vmatprep.subr.mxu0 %v497
    %1282 = vmatpush1.msra.mxu0 %v496
    %1283 = vmatprep.subr.mxu0 %v503
    %1284 = vmatpush1.msra.mxu0 %v502
    %1285 = vmatprep.subr.mxu0 %v509
    %1286 = vmatpush1.msra.mxu0 %v508
    %1287 = vmatprep.subr.mxu0 %v515
    %1288 = vmatpush1.msra.mxu0 %v514
    %1289 = vmatprep.subr.mxu0 %v521
    %1290 = vmatpush1.msra.mxu0 %v520
    %1291 = vmatprep.subr.mxu0 %v527
    %1292 = vmatpush1.msra.mxu0 %v526
    %1293 = vmatprep.subr.mxu0 %v533
    %1294 = vmatpush1.msra.mxu0 %v532
    %1295 = vmatprep.subr.mxu0 %v539
    %1296 = vmatpush1.msra.mxu0 %v538
    %1297 = vmatprep.subr.mxu0 %v545
    %1298 = vmatpush1.msra.mxu0 %v544
    %1299 = vmatprep.subr.mxu0 %v551
    %1300 = vmatpush1.msra.mxu0 %v550
    %1301 = vmatprep.subr.mxu0 %v557
    %1302 = vmatpush1.msra.mxu0 %v556
    %1303 = vmatprep.subr.mxu0 %v563
    %1304 = vmatpush1.msra.mxu0 %v562
    %1305 = vmatprep.subr.mxu0 %v569
    %1306 = vmatpush1.msra.mxu0 %v568
    %1307 = vmatprep.subr.mxu0 %v575
    %1308 = vmatpush1.msra.mxu0 %v574
    %1309 = vmatprep.subr.mxu0 %v581
    %1310 = vmatpush1.msra.mxu0 %v580
    %1311 = vmatprep.subr.mxu0 %v587
    %1312 = vmatpush1.msra.mxu0 %v586
    %1313 = vmatprep.subr.mxu0 %v593
    %1314 = vmatpush1.msra.mxu0 %v592
    %1315 = vmatprep.subr.mxu0 %v599
    %1316 = vmatpush1.msra.mxu0 %v598
    %1317 = vmatprep.subr.mxu0 %v605
    %1318 = vmatpush1.msra.mxu0 %v604
    %1319 = vmatprep.subr.mxu0 %v611
    %1320 = vmatpush1.msra.mxu0 %v610
    %1321 = vmatprep.subr.mxu0 %v617
    %1322 = vmatpush1.msra.mxu0 %v616
    %1323 = vmatprep.subr.mxu0 %v623
    %1324 = vmatpush1.msra.mxu0 %v622
    %1325 = vmatprep.subr.mxu0 %v629
    %1326 = vmatpush1.msra.mxu0 %v628
    %1327 = vmatprep.mubr.f32.mxu0 %v688
    %1328 = vmatmul.mubr.f32.gmra.mrb[0].mxu0 %v687
    %v1329 = vpop.f32.mrb[0].mxu0
    %v1330 = vadd.f32 %v1259, %v1329
    %v1331 = vpop.f32.mrb[0].mxu0
    %v1332 = vadd.f32 %v1261, %v1331
    %1333 = vdwg.mxu0
    %v1340 = vcombine.low %v904, %v906
    %v1341 = vcombine.low %v1117, %v1119
    %v1343 = vunpack.c.l.s4 1983009808
    %v1344 = vunpack.c.0.s8 %v1343
    %v1345 = vlaneseq
    %v1346 = vshrl.u32 %v1345, 7
    %v1347 = vsub.s32 %v1344, %v1346
    %v1348 = vrot.slane %v1340, %v1347
    %v1350 = vunpack.c.l.s4 1983009808
    %v1351 = vunpack.c.0.s8 %v1350
    %v1352 = vlaneseq
    %v1353 = vshrl.u32 %v1352, 7
    %v1354 = vsub.s32 %v1351, %v1353
    %v1355 = vrot.slane %v1341, %v1354
    %v1356 = vcombine.low %v1348, %v1355
    %v1357 = vcombine.low %v1330, %v1332
    %v1359 = vunpack.c.l.s4 1983009808
    %v1360 = vunpack.c.0.s8 %v1359
    %v1361 = vlaneseq
    %v1362 = vshrl.u32 %v1361, 7
    %v1363 = vsub.s32 %v1360, %v1362
    %v1364 = vrot.slane %v1357, %v1363
    %1367 = vst [vmem:[#allocation8] sm:$0xff] %v1356
    %1368 = vst [vmem:[#allocation8 + $0x8] sm:$0xf] %v1364
    // Predicated region
    $region26: #{tpu_custom_call.1} parent=1 // pred_check
      _
    $region27: #{tpu_custom_call.1} parent=1 // pred_check_branch
      %1370 = sbr.rel (0) target = $region29
    $region28: #{tpu_custom_call.1} parent=1 // pred_region
      %s1372 = ssub.s32 192, 192
      %1373 = vsyncadd [#allocation4], %s1372
      %s1375 = sshll.u32 [#allocation8], 4
      %s1376 = int_to_ptr.vmem [resolvable:$true] %s1375
      %1378 = dma.vmem_to_hbm [thread:$0]  %s1376, 192, %s3, [#allocation4]
    $region29: #{tpu_custom_call.1} parent=1 // pred_fallthru
      _
    // Predicated region
    $region30: #{tpu_custom_call.1} parent=1 // pred_check
      _
    $region31: #{tpu_custom_call.1} parent=1 // pred_check_branch
      %1380 = sbr.rel (0) target = $region33
    $region32: #{tpu_custom_call.1} parent=1 // pred_region
      %1381 = dma.done [#allocation4], 192
    $region33: #{tpu_custom_call.1} parent=1 // pred_fallthru
      _
    %1382 = vsyncpa [#allocation3], 1
    %1383 = vsyncpa [#allocation6], 1
    %1384 = vsyncpa [#allocation4], 1

</llo_original>
